<compile_context>
chip_gen: v7x
topology: tpu7x:2x2x1
jax: 0.10.0
libtpu: 0.0.40
codegen_flags: <defaults>
</compile_context>

<pallas_src>
import jax
import jax.numpy as jnp
from jax.experimental import pallas as pl
from jax.experimental.pallas import tpu as pltpu


def _round_up(x, m):
    return (x + m - 1) // m * m


def generator_kernel(noise_ref, att_ref, w3n_ref, w3a_ref, b3_ref,
                     w1_ref, b1_ref, w2_ref, b2_ref, o_ref):
    # fc3 (concat fused via split weights) + LeakyReLU(0.2)
    h = jnp.dot(noise_ref[...], w3n_ref[...], preferred_element_type=jnp.float32)
    h += jnp.dot(att_ref[...], w3a_ref[...], preferred_element_type=jnp.float32)
    h += b3_ref[...]
    h = jnp.maximum(h, 0.2 * h)
    # fc1 + LeakyReLU(0.2)
    h = jnp.dot(h.astype(jnp.bfloat16), w1_ref[...],
                preferred_element_type=jnp.float32) + b1_ref[...]
    h = jnp.maximum(h, 0.2 * h)
    # fc2 + ReLU
    h = jnp.dot(h.astype(jnp.bfloat16), w2_ref[...],
                preferred_element_type=jnp.float32) + b2_ref[...]
    o_ref[...] = jnp.maximum(h, 0.0).astype(o_ref.dtype)


def generator_forward(noise, att, params, *, block_rows=256):
    """noise: [B, nz], att: [B, attSize] -> [B, resSize] (float32)."""
    w3, b3, w1, b1, w2, b2 = params
    B, nz = noise.shape
    att_size = att.shape[1]
    hidden3 = w3.shape[1]          # 1024
    ngh = w1.shape[1]
    res_size = w2.shape[1]

    # bf16 operands for the MXU (accumulation stays f32 inside the kernel).
    noise = noise.astype(jnp.bfloat16)
    att = att.astype(jnp.bfloat16)
    w3 = w3.astype(jnp.bfloat16)
    w1 = w1.astype(jnp.bfloat16)
    w2 = w2.astype(jnp.bfloat16)
    b3 = b3.astype(jnp.float32)
    b1 = b1.astype(jnp.float32)
    b2 = b2.astype(jnp.float32)

    # Fuse the concat: split fc3's weight once at trace time.
    w3n, w3a = w3[:nz], w3[nz:]

    # Batch tiling: up to 256 rows per block (fills v6e/v7x's 256-wide MXU),
    # padded so every grid step sees a full block.
    bm = min(block_rows, _round_up(B, 8))
    padded_B = _round_up(B, bm)
    if padded_B != B:
        pad = padded_B - B
        noise = jnp.pad(noise, ((0, pad), (0, 0)))
        att = jnp.pad(att, ((0, pad), (0, 0)))
    grid = (padded_B // bm,)

    row_spec = lambda cols: pl.BlockSpec((bm, cols), lambda i: (i, 0))
    resident = lambda shape: pl.BlockSpec(shape, lambda i: (0, 0))

    # VMEM budget: resident weights + double-buffered row tiles + intermediates.
    # TODO(synk): if production ngh/resSize push resident weights past this
    # budget, tile fc1/fc2 over their output-feature (N) dimension instead.
    weight_bytes = sum(int(a.size) * a.dtype.itemsize
                       for a in (w3n, w3a, b3, w1, b1, w2, b2))
    io_bytes = 2 * bm * (nz + att_size) * 2 + 2 * bm * res_size * 4
    scratch_bytes = bm * (hidden3 + ngh + res_size) * 4
    vmem_limit = min(48 * 1024 * 1024,
                     max(16 * 1024 * 1024,
                         int(1.5 * (weight_bytes + io_bytes + scratch_bytes))))

    out = pl.pallas_call(
        generator_kernel,
        out_shape=jax.ShapeDtypeStruct((padded_B, res_size), jnp.float32),
        grid=grid,
        in_specs=[
            row_spec(nz),
            row_spec(att_size),
            resident(w3n.shape), resident(w3a.shape), resident(b3.shape),
            resident(w1.shape), resident(b1.shape),
            resident(w2.shape), resident(b2.shape),
        ],
        out_specs=row_spec(res_size),
        compiler_params=pltpu.CompilerParams(
            dimension_semantics=("parallel",),
            vmem_limit_bytes=vmem_limit,
        ),
    )(noise, att, w3n, w3a, b3, w1, b1, w2, b2)

    return out[:B]


def init_params(key, att_size, nz, ngh, res_size):
    """Deterministic init mirroring weights_init: W ~ N(0, 0.02), b = 0.
    Weights are stored pre-transposed as [in, out] so the kernel computes
    y = x @ W + b (equivalent to PyTorch's x @ W.T + b)."""
    k3, k1, k2 = jax.random.split(key, 3)
    in3 = att_size + nz
    w3 = 0.02 * jax.random.normal(k3, (in3, 1024), jnp.float32)
    b3 = jnp.zeros((1, 1024), jnp.float32)
    w1 = 0.02 * jax.random.normal(k1, (1024, ngh), jnp.float32)
    b1 = jnp.zeros((1, ngh), jnp.float32)
    w2 = 0.02 * jax.random.normal(k2, (ngh, res_size), jnp.float32)
    b2 = jnp.zeros((1, res_size), jnp.float32)
    return (w3, b3, w1, b1, w2, b2)


if __name__ == "__main__":
    # Small shapes consistent with the module (opt.attSize, opt.nz, opt.ngh, opt.resSize).
    B, att_size, nz, ngh, res_size = 8, 16, 16, 256, 512

    key = jax.random.PRNGKey(0)
    k_noise, k_att, k_params = jax.random.split(key, 3)

    noise = jax.random.normal(k_noise, (B, nz), jnp.float32)
    att = jax.random.normal(k_att, (B, att_size), jnp.float32)
    params = init_params(k_params, att_size, nz, ngh, res_size)

    out = generator_forward(noise, att, params)
    jax.block_until_ready(out)

    # Reference: same forward pass in plain JAX with matching bf16 matmuls
    # (f32 accumulation), so only accumulation-order noise remains.
    w3, b3, w1, b1, w2, b2 = params
    x = jnp.concatenate([noise, att], axis=1).astype(jnp.bfloat16)
    w3b, w1b, w2b = (w.astype(jnp.bfloat16) for w in (w3, w1, w2))
    dot = lambda a, b: jnp.dot(a, b, preferred_element_type=jnp.float32)
    lrelu = lambda v: jnp.maximum(v, 0.2 * v)
    h = lrelu(dot(x, w3b) + b3)
    h = lrelu(dot(h.astype(jnp.bfloat16), w1b) + b1)
    ref = jnp.maximum(dot(h.astype(jnp.bfloat16), w2b) + b2, 0.0)

    assert out.shape == (B, res_size)
    assert out.dtype == jnp.float32
    assert jnp.allclose(out, ref, atol=2e-2, rtol=2e-2)

    print("KERNEL_OK")
</pallas_src>

<mosaic_0001>
module attributes {stable_mosaic.version = 11 : i64} {
  func.func @generator_kernel(%arg0: i32, %arg1: memref<8x16xbf16, #tpu.memory_space<vmem>>, %arg2: memref<8x16xbf16, #tpu.memory_space<vmem>>, %arg3: memref<16x1024xbf16, #tpu.memory_space<vmem>>, %arg4: memref<16x1024xbf16, #tpu.memory_space<vmem>>, %arg5: memref<1x1024xf32, #tpu.memory_space<vmem>>, %arg6: memref<1024x256xbf16, #tpu.memory_space<vmem>>, %arg7: memref<1x256xf32, #tpu.memory_space<vmem>>, %arg8: memref<256x512xbf16, #tpu.memory_space<vmem>>, %arg9: memref<1x512xf32, #tpu.memory_space<vmem>>, %arg10: memref<8x512xf32, #tpu.memory_space<vmem>>) attributes {dimension_semantics = [#tpu.dimension_semantics<parallel>], iteration_bounds = array<i64: 1>, scalar_prefetch = 0 : i64, scratch_operands = 0 : i64, tpu.core_type = #tpu.core_type<tc>, window_params = [{transform_indices = @transform_0, window_bounds = array<i64: 8, 16>}, {transform_indices = @transform_1, window_bounds = array<i64: 8, 16>}, {pipeline_mode = #tpu.pipeline_mode<synchronous>, transform_indices = @transform_2, window_bounds = array<i64: 16, 1024>}, {pipeline_mode = #tpu.pipeline_mode<synchronous>, transform_indices = @transform_3, window_bounds = array<i64: 16, 1024>}, {pipeline_mode = #tpu.pipeline_mode<synchronous>, transform_indices = @transform_4, window_bounds = array<i64: 1, 1024>}, {pipeline_mode = #tpu.pipeline_mode<synchronous>, transform_indices = @transform_5, window_bounds = array<i64: 1024, 256>}, {pipeline_mode = #tpu.pipeline_mode<synchronous>, transform_indices = @transform_6, window_bounds = array<i64: 1, 256>}, {pipeline_mode = #tpu.pipeline_mode<synchronous>, transform_indices = @transform_7, window_bounds = array<i64: 256, 512>}, {pipeline_mode = #tpu.pipeline_mode<synchronous>, transform_indices = @transform_8, window_bounds = array<i64: 1, 512>}, {transform_indices = @transform_9, window_bounds = array<i64: 8, 512>}]} {
    %c0 = arith.constant 0 : index
    %c0_0 = arith.constant 0 : index
    %0 = vector.load %arg1[%c0, %c0_0] : memref<8x16xbf16, #tpu.memory_space<vmem>>, vector<8x16xbf16>
    %c0_1 = arith.constant 0 : index
    %c0_2 = arith.constant 0 : index
    %1 = vector.load %arg3[%c0_1, %c0_2] : memref<16x1024xbf16, #tpu.memory_space<vmem>>, vector<16x1024xbf16>
    %cst = arith.constant dense<0.000000e+00> : vector<8x1024xf32>
    %2 = tpu.matmul %0, %1, %cst {dimension_numbers = #tpu.dot_dimension_numbers<[1], [0], [0], [1], [0, 0, 1, 1], [], []>} : vector<8x16xbf16>, vector<16x1024xbf16>, vector<8x1024xf32> -> vector<8x1024xf32>
    %c0_3 = arith.constant 0 : index
    %c0_4 = arith.constant 0 : index
    %3 = vector.load %arg2[%c0_3, %c0_4] : memref<8x16xbf16, #tpu.memory_space<vmem>>, vector<8x16xbf16>
    %c0_5 = arith.constant 0 : index
    %c0_6 = arith.constant 0 : index
    %4 = vector.load %arg4[%c0_5, %c0_6] : memref<16x1024xbf16, #tpu.memory_space<vmem>>, vector<16x1024xbf16>
    %cst_7 = arith.constant dense<0.000000e+00> : vector<8x1024xf32>
    %5 = tpu.matmul %3, %4, %cst_7 {dimension_numbers = #tpu.dot_dimension_numbers<[1], [0], [0], [1], [0, 0, 1, 1], [], []>} : vector<8x16xbf16>, vector<16x1024xbf16>, vector<8x1024xf32> -> vector<8x1024xf32>
    %6 = arith.addf %2, %5 : vector<8x1024xf32>
    %c0_8 = arith.constant 0 : index
    %c0_9 = arith.constant 0 : index
    %7 = vector.load %arg5[%c0_8, %c0_9] : memref<1x1024xf32, #tpu.memory_space<vmem>>, vector<1x1024xf32>
    %8 = vector.broadcast %7 : vector<1x1024xf32> to vector<8x1024xf32>
    %9 = arith.addf %6, %8 : vector<8x1024xf32>
    %cst_10 = arith.constant 2.000000e-01 : f32
    %10 = vector.broadcast %cst_10 : f32 to vector<8x1024xf32>
    %11 = arith.mulf %10, %9 : vector<8x1024xf32>
    %12 = arith.maximumf %9, %11 : vector<8x1024xf32>
    %13 = arith.truncf %12 : vector<8x1024xf32> to vector<8x1024xbf16>
    %c0_11 = arith.constant 0 : index
    %c0_12 = arith.constant 0 : index
    %14 = vector.load %arg6[%c0_11, %c0_12] : memref<1024x256xbf16, #tpu.memory_space<vmem>>, vector<1024x256xbf16>
    %cst_13 = arith.constant dense<0.000000e+00> : vector<8x256xf32>
    %15 = tpu.matmul %13, %14, %cst_13 {dimension_numbers = #tpu.dot_dimension_numbers<[1], [0], [0], [1], [0, 0, 1, 1], [], []>} : vector<8x1024xbf16>, vector<1024x256xbf16>, vector<8x256xf32> -> vector<8x256xf32>
    %c0_14 = arith.constant 0 : index
    %c0_15 = arith.constant 0 : index
    %16 = vector.load %arg7[%c0_14, %c0_15] : memref<1x256xf32, #tpu.memory_space<vmem>>, vector<1x256xf32>
    %17 = vector.broadcast %16 : vector<1x256xf32> to vector<8x256xf32>
    %18 = arith.addf %15, %17 : vector<8x256xf32>
    %cst_16 = arith.constant 2.000000e-01 : f32
    %19 = vector.broadcast %cst_16 : f32 to vector<8x256xf32>
    %20 = arith.mulf %19, %18 : vector<8x256xf32>
    %21 = arith.maximumf %18, %20 : vector<8x256xf32>
    %22 = arith.truncf %21 : vector<8x256xf32> to vector<8x256xbf16>
    %c0_17 = arith.constant 0 : index
    %c0_18 = arith.constant 0 : index
    %23 = vector.load %arg8[%c0_17, %c0_18] : memref<256x512xbf16, #tpu.memory_space<vmem>>, vector<256x512xbf16>
    %cst_19 = arith.constant dense<0.000000e+00> : vector<8x512xf32>
    %24 = tpu.matmul %22, %23, %cst_19 {dimension_numbers = #tpu.dot_dimension_numbers<[1], [0], [0], [1], [0, 0, 1, 1], [], []>} : vector<8x256xbf16>, vector<256x512xbf16>, vector<8x512xf32> -> vector<8x512xf32>
    %c0_20 = arith.constant 0 : index
    %c0_21 = arith.constant 0 : index
    %25 = vector.load %arg9[%c0_20, %c0_21] : memref<1x512xf32, #tpu.memory_space<vmem>>, vector<1x512xf32>
    %26 = vector.broadcast %25 : vector<1x512xf32> to vector<8x512xf32>
    %27 = arith.addf %24, %26 : vector<8x512xf32>
    %cst_22 = arith.constant 0.000000e+00 : f32
    %28 = vector.broadcast %cst_22 : f32 to vector<8x512xf32>
    %29 = arith.maximumf %27, %28 : vector<8x512xf32>
    %c0_23 = arith.constant 0 : index
    %c0_24 = arith.constant 0 : index
    %30 = vector.load %arg10[%c0_23, %c0_24] : memref<8x512xf32, #tpu.memory_space<vmem>>, vector<8x512xf32>
    tpu.vector_store %arg10[%c0_23, %c0_24], %29 {strides = array<i32>} : memref<8x512xf32, #tpu.memory_space<vmem>>, vector<8x512xf32>,
    return
  }
  func.func @transform_0(%arg0: i32) -> (i32, i32) {
    %c0_i32 = arith.constant 0 : i32
    %c0_i32_0 = arith.constant 0 : i32
    return %arg0, %c0_i32 : i32, i32
  }
  func.func @transform_1(%arg0: i32) -> (i32, i32) {
    %c0_i32 = arith.constant 0 : i32
    %c0_i32_0 = arith.constant 0 : i32
    return %arg0, %c0_i32 : i32, i32
  }
  func.func @transform_2(%arg0: i32) -> (i32, i32) {
    %c0_i32 = arith.constant 0 : i32
    %c0_i32_0 = arith.constant 0 : i32
    %c0_i32_1 = arith.constant 0 : i32
    return %c0_i32, %c0_i32_0 : i32, i32
  }
  func.func @transform_3(%arg0: i32) -> (i32, i32) {
    %c0_i32 = arith.constant 0 : i32
    %c0_i32_0 = arith.constant 0 : i32
    %c0_i32_1 = arith.constant 0 : i32
    return %c0_i32, %c0_i32_0 : i32, i32
  }
  func.func @transform_4(%arg0: i32) -> (i32, i32) {
    %c0_i32 = arith.constant 0 : i32
    %c0_i32_0 = arith.constant 0 : i32
    %c0_i32_1 = arith.constant 0 : i32
    return %c0_i32, %c0_i32_0 : i32, i32
  }
  func.func @transform_5(%arg0: i32) -> (i32, i32) {
    %c0_i32 = arith.constant 0 : i32
    %c0_i32_0 = arith.constant 0 : i32
    %c0_i32_1 = arith.constant 0 : i32
    return %c0_i32, %c0_i32_0 : i32, i32
  }
  func.func @transform_6(%arg0: i32) -> (i32, i32) {
    %c0_i32 = arith.constant 0 : i32
    %c0_i32_0 = arith.constant 0 : i32
    %c0_i32_1 = arith.constant 0 : i32
    return %c0_i32, %c0_i32_0 : i32, i32
  }
  func.func @transform_7(%arg0: i32) -> (i32, i32) {
    %c0_i32 = arith.constant 0 : i32
    %c0_i32_0 = arith.constant 0 : i32
    %c0_i32_1 = arith.constant 0 : i32
    return %c0_i32, %c0_i32_0 : i32, i32
  }
  func.func @transform_8(%arg0: i32) -> (i32, i32) {
    %c0_i32 = arith.constant 0 : i32
    %c0_i32_0 = arith.constant 0 : i32
    %c0_i32_1 = arith.constant 0 : i32
    return %c0_i32, %c0_i32_0 : i32, i32
  }
  func.func @transform_9(%arg0: i32) -> (i32, i32) {
    %c0_i32 = arith.constant 0 : i32
    %c0_i32_0 = arith.constant 0 : i32
    return %arg0, %c0_i32 : i32, i32
  }
}

</mosaic_0001>

<llo_original>
// kernel: tpu_custom_call.1
$region0: #{tpu_custom_call.1}
  #allocation0 [shape = 'u32[]', space=smem, size = 0x4, offset = 0x4, fixed_abs, tag = 'smem constant byte address 0x4 - core index']
  #allocation1 [shape = 'u32[144,128]{1,0:T(1,128)}', space=vmem, size = 0x12000, scoped, tag = 'internal scratch']
  %s0 = inlined_call_operand.hbm [shape: bf16[8,16], index: 0, kind: input, shape index: {}]
  %s1 = inlined_call_operand.hbm [shape: bf16[8,16], index: 1, kind: input, shape index: {}]
  %s2 = inlined_call_operand.hbm [shape: bf16[16,1024], index: 2, kind: input, shape index: {}]
  %s3 = inlined_call_operand.hbm [shape: bf16[16,1024], index: 3, kind: input, shape index: {}]
  %s4 = inlined_call_operand.vmem [shape: f32[1,1024], index: 4, kind: input, shape index: {}]
  %s5 = inlined_call_operand.hbm [shape: bf16[1024,256], index: 5, kind: input, shape index: {}]
  %s6 = inlined_call_operand.vmem [shape: f32[1,256], index: 6, kind: input, shape index: {}]
  %s7 = inlined_call_operand.hbm [shape: bf16[256,512], index: 7, kind: input, shape index: {}]
  %s8 = inlined_call_operand.vmem [shape: f32[1,512], index: 8, kind: input, shape index: {}]
  %s9 = inlined_call_operand.hbm [shape: f32[8,512], index: 9, kind: output, shape index: {}]
  %s10 = sld [smem:[#allocation0]]
  $region70: #{tpu_custom_call.1} parent=0
    _
  %s12 = ssub.s32 1, %s10
  %s13 = scalar_select 0, %s12, %s10
  $region1: #{tpu_custom_call.1} parent=0
    #allocation2 [shape = 'u8[2048]{0}', space=vmem, size = 0x800, scoped, tag = 'input window, operand 0, single buffered']
    #allocation3 [shape = 's32[1]{0}', space=sflag, size = 0x4, scoped, tag = 'scoped memory for tpu_custom_call.1']
    #allocation4 [shape = 's32[1]{0}', space=sflag, size = 0x4, scoped, tag = 'scoped memory for tpu_custom_call.1']
    #allocation5 [shape = 'u8[2048]{0}', space=vmem, size = 0x800, scoped, tag = 'input window, operand 1, single buffered']
    #allocation6 [shape = 's32[1]{0}', space=sflag, size = 0x4, scoped, tag = 'scoped memory for tpu_custom_call.1']
    #allocation7 [shape = 'u8[32768]{0}', space=vmem, size = 0x8000, scoped, tag = 'input window, operand 2, single buffered']
    #allocation8 [shape = 'u8[32768]{0}', space=vmem, size = 0x8000, scoped, tag = 'input window, operand 3, single buffered']
    #allocation9 [shape = 's32[1]{0}', space=sflag, size = 0x4, scoped, tag = 'scoped memory for tpu_custom_call.1']
    #allocation10 [shape = 'u8[524288]{0}', space=vmem, size = 0x80000, scoped, tag = 'input window, operand 5, single buffered']
    #allocation11 [shape = 'u8[262144]{0}', space=vmem, size = 0x40000, scoped, tag = 'input window, operand 7, single buffered']
    #allocation12 [shape = 's32[1]{0}', space=sflag, size = 0x4, scoped, tag = 'scoped memory for tpu_custom_call.1']
    #allocation13 [shape = 'u8[16384]{0}', space=vmem, size = 0x4000, scoped, tag = 'output window, operand 0, single buffered']
    %14 = vsyncpa [#allocation3], 0
    %15 = vsyncpa [#allocation6], 0
    %16 = vsyncpa [#allocation9], 0
    %17 = vsyncpa [#allocation12], 0
    %18 = vsyncpa [#allocation4], 0
    // Predicated region
    $region2: #{tpu_custom_call.1} parent=1 // pred_check
      _
    $region3: #{tpu_custom_call.1} parent=1 // pred_check_branch
      %20 = sbr.rel (0) target = $region5
    $region4: #{tpu_custom_call.1} parent=1 // pred_region
      %s22 = ssub.s32 64, 64
      %23 = vsyncadd [#allocation3], %s22
      %s25 = sshll.u32 [#allocation2], 4
      %s26 = int_to_ptr.vmem [resolvable:$true] %s25
      %28 = dma.hbm_to_vmem [thread:$0]  %s0, 64, %s26, [#allocation3]
    $region5: #{tpu_custom_call.1} parent=1 // pred_fallthru
      _
    // Predicated region
    $region6: #{tpu_custom_call.1} parent=1 // pred_check
      _
    $region7: #{tpu_custom_call.1} parent=1 // pred_check_branch
      %30 = sbr.rel (0) target = $region9
    $region8: #{tpu_custom_call.1} parent=1 // pred_region
      %s32 = ssub.s32 64, 64
      %33 = vsyncadd [#allocation6], %s32
      %s35 = sshll.u32 [#allocation5], 4
      %s36 = int_to_ptr.vmem [resolvable:$true] %s35
      %38 = dma.hbm_to_vmem [thread:$0]  %s1, 64, %s36, [#allocation6]
    $region9: #{tpu_custom_call.1} parent=1 // pred_fallthru
      _
    // Predicated region
    $region10: #{tpu_custom_call.1} parent=1 // pred_check
      _
    $region11: #{tpu_custom_call.1} parent=1 // pred_check_branch
      %40 = sbr.rel (0) target = $region13
    $region12: #{tpu_custom_call.1} parent=1 // pred_region
      %s42 = ssub.s32 1024, 1024
      %43 = vsyncadd [#allocation6], %s42
      %s44 = sshll.u32 [#allocation7], 4
      %s45 = int_to_ptr.vmem [resolvable:$true] %s44
      %50 = dma.hbm_to_vmem [thread:$0]  %s2, 1024, %s45, [#allocation6], 512, 512, 32
    $region13: #{tpu_custom_call.1} parent=1 // pred_fallthru
      _
    // Predicated region
    $region14: #{tpu_custom_call.1} parent=1 // pred_check
      _
    $region15: #{tpu_custom_call.1} parent=1 // pred_check_branch
      %52 = sbr.rel (0) target = $region17
    $region16: #{tpu_custom_call.1} parent=1 // pred_region
      %s54 = ssub.s32 1024, 1024
      %55 = vsyncadd [#allocation9], %s54
      %s56 = sshll.u32 [#allocation8], 4
      %s57 = int_to_ptr.vmem [resolvable:$true] %s56
      %62 = dma.hbm_to_vmem [thread:$0]  %s3, 1024, %s57, [#allocation9], 512, 512, 32
    $region17: #{tpu_custom_call.1} parent=1 // pred_fallthru
      _
    // Predicated region
    $region18: #{tpu_custom_call.1} parent=1 // pred_check
      _
    $region19: #{tpu_custom_call.1} parent=1 // pred_check_branch
      %64 = sbr.rel (0) target = $region21
    $region20: #{tpu_custom_call.1} parent=1 // pred_region
      _
    $region21: #{tpu_custom_call.1} parent=1 // pred_fallthru
      _
    // Predicated region
    $region22: #{tpu_custom_call.1} parent=1 // pred_check
      _
    $region23: #{tpu_custom_call.1} parent=1 // pred_check_branch
      %66 = sbr.rel (0) target = $region25
    $region24: #{tpu_custom_call.1} parent=1 // pred_region
      %s68 = ssub.s32 16384, 16384
      %69 = vsyncadd [#allocation9], %s68
      %s70 = sshll.u32 [#allocation10], 4
      %s71 = int_to_ptr.vmem [resolvable:$true] %s70
      %76 = dma.hbm_to_vmem [thread:$0]  %s5, 16384, %s71, [#allocation9], 128, 128, 8
    $region25: #{tpu_custom_call.1} parent=1 // pred_fallthru
      _
    // Predicated region
    $region26: #{tpu_custom_call.1} parent=1 // pred_check
      _
    $region27: #{tpu_custom_call.1} parent=1 // pred_check_branch
      %78 = sbr.rel (0) target = $region29
    $region28: #{tpu_custom_call.1} parent=1 // pred_region
      _
    $region29: #{tpu_custom_call.1} parent=1 // pred_fallthru
      _
    // Predicated region
    $region30: #{tpu_custom_call.1} parent=1 // pred_check
      _
    $region31: #{tpu_custom_call.1} parent=1 // pred_check_branch
      %80 = sbr.rel (0) target = $region33
    $region32: #{tpu_custom_call.1} parent=1 // pred_region
      %s82 = ssub.s32 8192, 8192
      %83 = vsyncadd [#allocation12], %s82
      %s84 = sshll.u32 [#allocation11], 4
      %s85 = int_to_ptr.vmem [resolvable:$true] %s84
      %90 = dma.hbm_to_vmem [thread:$0]  %s7, 8192, %s85, [#allocation12], 256, 256, 16
    $region33: #{tpu_custom_call.1} parent=1 // pred_fallthru
      _
    // Predicated region
    $region34: #{tpu_custom_call.1} parent=1 // pred_check
      _
    $region35: #{tpu_custom_call.1} parent=1 // pred_check_branch
      %92 = sbr.rel (0) target = $region37
    $region36: #{tpu_custom_call.1} parent=1 // pred_region
      _
    $region37: #{tpu_custom_call.1} parent=1 // pred_fallthru
      _
    // Predicated region
    $region38: #{tpu_custom_call.1} parent=1 // pred_check
      _
    $region39: #{tpu_custom_call.1} parent=1 // pred_check_branch
      %94 = sbr.rel (0) target = $region41
    $region40: #{tpu_custom_call.1} parent=1 // pred_region
      %95 = dma.done [#allocation3], 64
    $region41: #{tpu_custom_call.1} parent=1 // pred_fallthru
      _
    // Predicated region
    $region42: #{tpu_custom_call.1} parent=1 // pred_check
      _
    $region43: #{tpu_custom_call.1} parent=1 // pred_check_branch
      %97 = sbr.rel (0) target = $region45
    $region44: #{tpu_custom_call.1} parent=1 // pred_region
      %98 = dma.done [#allocation6], 64
    $region45: #{tpu_custom_call.1} parent=1 // pred_fallthru
      _
    // Predicated region
    $region46: #{tpu_custom_call.1} parent=1 // pred_check
      _
    $region47: #{tpu_custom_call.1} parent=1 // pred_check_branch
      %100 = sbr.rel (0) target = $region49
    $region48: #{tpu_custom_call.1} parent=1 // pred_region
      %101 = dma.done [#allocation6], 1024
    $region49: #{tpu_custom_call.1} parent=1 // pred_fallthru
      _
    // Predicated region
    $region50: #{tpu_custom_call.1} parent=1 // pred_check
      _
    $region51: #{tpu_custom_call.1} parent=1 // pred_check_branch
      %103 = sbr.rel (0) target = $region53
    $region52: #{tpu_custom_call.1} parent=1 // pred_region
      %104 = dma.done [#allocation9], 1024
    $region53: #{tpu_custom_call.1} parent=1 // pred_fallthru
      _
    // Predicated region
    $region54: #{tpu_custom_call.1} parent=1 // pred_check
      _
    $region55: #{tpu_custom_call.1} parent=1 // pred_check_branch
      %106 = sbr.rel (0) target = $region57
    $region56: #{tpu_custom_call.1} parent=1 // pred_region
      %107 = dma.done [#allocation9], 16384
    $region57: #{tpu_custom_call.1} parent=1 // pred_fallthru
      _
    // Predicated region
    $region58: #{tpu_custom_call.1} parent=1 // pred_check
      _
    $region59: #{tpu_custom_call.1} parent=1 // pred_check_branch
      %109 = sbr.rel (0) target = $region61
    $region60: #{tpu_custom_call.1} parent=1 // pred_region
      %110 = dma.done [#allocation12], 8192
    $region61: #{tpu_custom_call.1} parent=1 // pred_fallthru
      _
    %v112 = vld [vmem:[#allocation2] sm:$0xf]
    %v113 = vld [vmem:[#allocation7] sm:$0xff]
    %v114 = vld [vmem:[#allocation7 + $0x8] sm:$0xff]
    %v115 = vld [vmem:[#allocation7 + $0x10] sm:$0xff]
    %v116 = vld [vmem:[#allocation7 + $0x18] sm:$0xff]
    %v117 = vld [vmem:[#allocation7 + $0x20] sm:$0xff]
    %v118 = vld [vmem:[#allocation7 + $0x28] sm:$0xff]
    %v119 = vld [vmem:[#allocation7 + $0x30] sm:$0xff]
    %v120 = vld [vmem:[#allocation7 + $0x38] sm:$0xff]
    %v121 = vld [vmem:[#allocation5] sm:$0xf]
    %v122 = vld [vmem:[#allocation8] sm:$0xff]
    %v123 = vld [vmem:[#allocation8 + $0x8] sm:$0xff]
    %v124 = vld [vmem:[#allocation8 + $0x10] sm:$0xff]
    %v125 = vld [vmem:[#allocation8 + $0x18] sm:$0xff]
    %v126 = vld [vmem:[#allocation8 + $0x20] sm:$0xff]
    %v127 = vld [vmem:[#allocation8 + $0x28] sm:$0xff]
    %v128 = vld [vmem:[#allocation8 + $0x30] sm:$0xff]
    %v129 = vld [vmem:[#allocation8 + $0x38] sm:$0xff]
    %v138 = vunpack.c.l.b16 %v122
    %v139 = vunpack.c.h.b16 %v122
    %v140 = vunpack.c.l.b16 %v123
    %v141 = vunpack.c.h.b16 %v123
    %v142 = vunpack.c.l.b16 %v124
    %v143 = vunpack.c.h.b16 %v124
    %v144 = vunpack.c.l.b16 %v125
    %v145 = vunpack.c.h.b16 %v125
    %v146 = vunpack.c.l.b16 %v126
    %v147 = vunpack.c.h.b16 %v126
    %v148 = vunpack.c.l.b16 %v127
    %v149 = vunpack.c.h.b16 %v127
    %v150 = vunpack.c.l.b16 %v128
    %v151 = vunpack.c.h.b16 %v128
    %v152 = vunpack.c.l.b16 %v129
    %v153 = vunpack.c.h.b16 %v129
    %v154 = vpack.c.b16 %v146, %v138
    %v155 = vpack.c.b16 %v147, %v139
    %v156 = vpack.c.b16 %v148, %v140
    %v157 = vpack.c.b16 %v149, %v141
    %v158 = vpack.c.b16 %v150, %v142
    %v159 = vpack.c.b16 %v151, %v143
    %v160 = vpack.c.b16 %v152, %v144
    %v161 = vpack.c.b16 %v153, %v145
    %vm170 = vcmask 130048
    %v172 = vsel %vm170, %v121, 0
    %174 = vmatprep.subr.bf16.mxu0 %v155
    %175 = vmatpush1.bf16.msra.mxu0 %v154
    %176 = vmatprep.subr.bf16.mxu0 0
    %177 = vmatpush1.bf16.msra.mxu0 0
    %178 = vmatprep.subr.bf16.mxu0 0
    %179 = vmatpush1.bf16.msra.mxu0 0
    %180 = vmatprep.subr.bf16.mxu0 0
    %181 = vmatpush1.bf16.msra.mxu0 0
    %182 = vmatprep.subr.bf16.mxu0 0
    %183 = vmatpush1.bf16.msra.mxu0 0
    %184 = vmatprep.subr.bf16.mxu0 0
    %185 = vmatpush1.bf16.msra.mxu0 0
    %186 = vmatprep.subr.bf16.mxu0 0
    %187 = vmatpush1.bf16.msra.mxu0 0
    %188 = vmatprep.subr.bf16.mxu0 0
    %189 = vmatpush1.bf16.msra.mxu0 0
    %190 = vmatprep.subr.bf16.mxu0 0
    %191 = vmatpush1.bf16.msra.mxu0 0
    %192 = vmatprep.subr.bf16.mxu0 0
    %193 = vmatpush1.bf16.msra.mxu0 0
    %194 = vmatprep.subr.bf16.mxu0 0
    %195 = vmatpush1.bf16.msra.mxu0 0
    %196 = vmatprep.subr.bf16.mxu0 0
    %197 = vmatpush1.bf16.msra.mxu0 0
    %198 = vmatprep.subr.bf16.mxu0 0
    %199 = vmatpush1.bf16.msra.mxu0 0
    %200 = vmatprep.subr.bf16.mxu0 0
    %201 = vmatpush1.bf16.msra.mxu0 0
    %202 = vmatprep.subr.bf16.mxu0 0
    %203 = vmatpush1.bf16.msra.mxu0 0
    %204 = vmatprep.subr.bf16.mxu0 0
    %205 = vmatpush1.bf16.msra.mxu0 0
    %206 = vmatprep.mubr.bf16.mxu0 0
    %207 = vmatmul.mubr.bf16.gmra.mrb[0].mxu0 %v172
    %v208 = vpop.f32.mrb[0].mxu0
    %v209 = vadd.f32 0.0, %v208
    %v210 = vpop.f32.mrb[0].mxu0
    %v211 = vadd.f32 0.0, %v210
    %v212 = vpop.f32.mrb[0].mxu0
    %v213 = vpop.f32.mrb[0].mxu0
    %214 = vdwg.mxu0
    %215 = vmatprep.subr.bf16.mxu0 %v157
    %216 = vmatpush1.bf16.msra.mxu0 %v156
    %217 = vmatprep.subr.bf16.mxu0 0
    %218 = vmatpush1.bf16.msra.mxu0 0
    %219 = vmatprep.subr.bf16.mxu0 0
    %220 = vmatpush1.bf16.msra.mxu0 0
    %221 = vmatprep.subr.bf16.mxu0 0
    %222 = vmatpush1.bf16.msra.mxu0 0
    %223 = vmatprep.subr.bf16.mxu0 0
    %224 = vmatpush1.bf16.msra.mxu0 0
    %225 = vmatprep.subr.bf16.mxu0 0
    %226 = vmatpush1.bf16.msra.mxu0 0
    %227 = vmatprep.subr.bf16.mxu0 0
    %228 = vmatpush1.bf16.msra.mxu0 0
    %229 = vmatprep.subr.bf16.mxu0 0
    %230 = vmatpush1.bf16.msra.mxu0 0
    %231 = vmatprep.subr.bf16.mxu0 0
    %232 = vmatpush1.bf16.msra.mxu0 0
    %233 = vmatprep.subr.bf16.mxu0 0
    %234 = vmatpush1.bf16.msra.mxu0 0
    %235 = vmatprep.subr.bf16.mxu0 0
    %236 = vmatpush1.bf16.msra.mxu0 0
    %237 = vmatprep.subr.bf16.mxu0 0
    %238 = vmatpush1.bf16.msra.mxu0 0
    %239 = vmatprep.subr.bf16.mxu0 0
    %240 = vmatpush1.bf16.msra.mxu0 0
    %241 = vmatprep.subr.bf16.mxu0 0
    %242 = vmatpush1.bf16.msra.mxu0 0
    %243 = vmatprep.subr.bf16.mxu0 0
    %244 = vmatpush1.bf16.msra.mxu0 0
    %245 = vmatprep.subr.bf16.mxu0 0
    %246 = vmatpush1.bf16.msra.mxu0 0
    %247 = vmatprep.mubr.bf16.mxu0 0
    %248 = vmatmul.mubr.bf16.gmra.mrb[0].mxu0 %v172
    %v249 = vpop.f32.mrb[0].mxu0
    %v250 = vadd.f32 0.0, %v249
    %v251 = vpop.f32.mrb[0].mxu0
    %v252 = vadd.f32 0.0, %v251
    %v253 = vpop.f32.mrb[0].mxu0
    %v254 = vpop.f32.mrb[0].mxu0
    %255 = vdwg.mxu0
    %256 = vmatprep.subr.bf16.mxu0 %v159
    %257 = vmatpush1.bf16.msra.mxu0 %v158
    %258 = vmatprep.subr.bf16.mxu0 0
    %259 = vmatpush1.bf16.msra.mxu0 0
    %260 = vmatprep.subr.bf16.mxu0 0
    %261 = vmatpush1.bf16.msra.mxu0 0
    %262 = vmatprep.subr.bf16.mxu0 0
    %263 = vmatpush1.bf16.msra.mxu0 0
    %264 = vmatprep.subr.bf16.mxu0 0
    %265 = vmatpush1.bf16.msra.mxu0 0
    %266 = vmatprep.subr.bf16.mxu0 0
    %267 = vmatpush1.bf16.msra.mxu0 0
    %268 = vmatprep.subr.bf16.mxu0 0
    %269 = vmatpush1.bf16.msra.mxu0 0
    %270 = vmatprep.subr.bf16.mxu0 0
    %271 = vmatpush1.bf16.msra.mxu0 0
    %272 = vmatprep.subr.bf16.mxu0 0
    %273 = vmatpush1.bf16.msra.mxu0 0
    %274 = vmatprep.subr.bf16.mxu0 0
    %275 = vmatpush1.bf16.msra.mxu0 0
    %276 = vmatprep.subr.bf16.mxu0 0
    %277 = vmatpush1.bf16.msra.mxu0 0
    %278 = vmatprep.subr.bf16.mxu0 0
    %279 = vmatpush1.bf16.msra.mxu0 0
    %280 = vmatprep.subr.bf16.mxu0 0
    %281 = vmatpush1.bf16.msra.mxu0 0
    %282 = vmatprep.subr.bf16.mxu0 0
    %283 = vmatpush1.bf16.msra.mxu0 0
    %284 = vmatprep.subr.bf16.mxu0 0
    %285 = vmatpush1.bf16.msra.mxu0 0
    %286 = vmatprep.subr.bf16.mxu0 0
    %287 = vmatpush1.bf16.msra.mxu0 0
    %288 = vmatprep.mubr.bf16.mxu0 0
    %289 = vmatmul.mubr.bf16.gmra.mrb[0].mxu0 %v172
    %v290 = vpop.f32.mrb[0].mxu0
    %v291 = vadd.f32 0.0, %v290
    %v292 = vpop.f32.mrb[0].mxu0
    %v293 = vadd.f32 0.0, %v292
    %v294 = vpop.f32.mrb[0].mxu0
    %v295 = vpop.f32.mrb[0].mxu0
    %296 = vdwg.mxu0
    %297 = vmatprep.subr.bf16.mxu0 %v161
    %298 = vmatpush1.bf16.msra.mxu0 %v160
    %299 = vmatprep.subr.bf16.mxu0 0
    %300 = vmatpush1.bf16.msra.mxu0 0
    %301 = vmatprep.subr.bf16.mxu0 0
    %302 = vmatpush1.bf16.msra.mxu0 0
    %303 = vmatprep.subr.bf16.mxu0 0
    %304 = vmatpush1.bf16.msra.mxu0 0
    %305 = vmatprep.subr.bf16.mxu0 0
    %306 = vmatpush1.bf16.msra.mxu0 0
    %307 = vmatprep.subr.bf16.mxu0 0
    %308 = vmatpush1.bf16.msra.mxu0 0
    %309 = vmatprep.subr.bf16.mxu0 0
    %310 = vmatpush1.bf16.msra.mxu0 0
    %311 = vmatprep.subr.bf16.mxu0 0
    %312 = vmatpush1.bf16.msra.mxu0 0
    %313 = vmatprep.subr.bf16.mxu0 0
    %314 = vmatpush1.bf16.msra.mxu0 0
    %315 = vmatprep.subr.bf16.mxu0 0
    %316 = vmatpush1.bf16.msra.mxu0 0
    %317 = vmatprep.subr.bf16.mxu0 0
    %318 = vmatpush1.bf16.msra.mxu0 0
    %319 = vmatprep.subr.bf16.mxu0 0
    %320 = vmatpush1.bf16.msra.mxu0 0
    %321 = vmatprep.subr.bf16.mxu0 0
    %322 = vmatpush1.bf16.msra.mxu0 0
    %323 = vmatprep.subr.bf16.mxu0 0
    %324 = vmatpush1.bf16.msra.mxu0 0
    %325 = vmatprep.subr.bf16.mxu0 0
    %326 = vmatpush1.bf16.msra.mxu0 0
    %327 = vmatprep.subr.bf16.mxu0 0
    %328 = vmatpush1.bf16.msra.mxu0 0
    %329 = vmatprep.mubr.bf16.mxu0 0
    %330 = vmatmul.mubr.bf16.gmra.mrb[0].mxu0 %v172
    %v331 = vpop.f32.mrb[0].mxu0
    %v332 = vadd.f32 0.0, %v331
    %v333 = vpop.f32.mrb[0].mxu0
    %v334 = vadd.f32 0.0, %v333
    %v335 = vpop.f32.mrb[0].mxu0
    %v336 = vpop.f32.mrb[0].mxu0
    %337 = vdwg.mxu0
    %v346 = vunpack.c.l.b16 %v113
    %v347 = vunpack.c.h.b16 %v113
    %v348 = vunpack.c.l.b16 %v114
    %v349 = vunpack.c.h.b16 %v114
    %v350 = vunpack.c.l.b16 %v115
    %v351 = vunpack.c.h.b16 %v115
    %v352 = vunpack.c.l.b16 %v116
    %v353 = vunpack.c.h.b16 %v116
    %v354 = vunpack.c.l.b16 %v117
    %v355 = vunpack.c.h.b16 %v117
    %v356 = vunpack.c.l.b16 %v118
    %v357 = vunpack.c.h.b16 %v118
    %v358 = vunpack.c.l.b16 %v119
    %v359 = vunpack.c.h.b16 %v119
    %v360 = vunpack.c.l.b16 %v120
    %v361 = vunpack.c.h.b16 %v120
    %v362 = vpack.c.b16 %v354, %v346
    %v363 = vpack.c.b16 %v355, %v347
    %v364 = vpack.c.b16 %v356, %v348
    %v365 = vpack.c.b16 %v357, %v349
    %v366 = vpack.c.b16 %v358, %v350
    %v367 = vpack.c.b16 %v359, %v351
    %v368 = vpack.c.b16 %v360, %v352
    %v369 = vpack.c.b16 %v361, %v353
    %v379 = vsel %vm170, %v112, 0
    %381 = vmatprep.subr.bf16.mxu0 %v363
    %382 = vmatpush1.bf16.msra.mxu0 %v362
    %383 = vmatprep.subr.bf16.mxu0 0
    %384 = vmatpush1.bf16.msra.mxu0 0
    %385 = vmatprep.subr.bf16.mxu0 0
    %386 = vmatpush1.bf16.msra.mxu0 0
    %387 = vmatprep.subr.bf16.mxu0 0
    %388 = vmatpush1.bf16.msra.mxu0 0
    %389 = vmatprep.subr.bf16.mxu0 0
    %390 = vmatpush1.bf16.msra.mxu0 0
    %391 = vmatprep.subr.bf16.mxu0 0
    %392 = vmatpush1.bf16.msra.mxu0 0
    %393 = vmatprep.subr.bf16.mxu0 0
    %394 = vmatpush1.bf16.msra.mxu0 0
    %395 = vmatprep.subr.bf16.mxu0 0
    %396 = vmatpush1.bf16.msra.mxu0 0
    %397 = vmatprep.subr.bf16.mxu0 0
    %398 = vmatpush1.bf16.msra.mxu0 0
    %399 = vmatprep.subr.bf16.mxu0 0
    %400 = vmatpush1.bf16.msra.mxu0 0
    %401 = vmatprep.subr.bf16.mxu0 0
    %402 = vmatpush1.bf16.msra.mxu0 0
    %403 = vmatprep.subr.bf16.mxu0 0
    %404 = vmatpush1.bf16.msra.mxu0 0
    %405 = vmatprep.subr.bf16.mxu0 0
    %406 = vmatpush1.bf16.msra.mxu0 0
    %407 = vmatprep.subr.bf16.mxu0 0
    %408 = vmatpush1.bf16.msra.mxu0 0
    %409 = vmatprep.subr.bf16.mxu0 0
    %410 = vmatpush1.bf16.msra.mxu0 0
    %411 = vmatprep.subr.bf16.mxu0 0
    %412 = vmatpush1.bf16.msra.mxu0 0
    %413 = vmatprep.mubr.bf16.mxu0 0
    %414 = vmatmul.mubr.bf16.gmra.mrb[0].mxu0 %v379
    %v415 = vpop.f32.mrb[0].mxu0
    %v416 = vadd.f32 %v209, %v415
    %v417 = vpop.f32.mrb[0].mxu0
    %v418 = vadd.f32 %v211, %v417
    %v419 = vpop.f32.mrb[0].mxu0
    %v420 = vpop.f32.mrb[0].mxu0
    %421 = vdwg.mxu0
    %422 = vmatprep.subr.bf16.mxu0 %v365
    %423 = vmatpush1.bf16.msra.mxu0 %v364
    %424 = vmatprep.subr.bf16.mxu0 0
    %425 = vmatpush1.bf16.msra.mxu0 0
    %426 = vmatprep.subr.bf16.mxu0 0
    %427 = vmatpush1.bf16.msra.mxu0 0
    %428 = vmatprep.subr.bf16.mxu0 0
    %429 = vmatpush1.bf16.msra.mxu0 0
    %430 = vmatprep.subr.bf16.mxu0 0
    %431 = vmatpush1.bf16.msra.mxu0 0
    %432 = vmatprep.subr.bf16.mxu0 0
    %433 = vmatpush1.bf16.msra.mxu0 0
    %434 = vmatprep.subr.bf16.mxu0 0
    %435 = vmatpush1.bf16.msra.mxu0 0
    %436 = vmatprep.subr.bf16.mxu0 0
    %437 = vmatpush1.bf16.msra.mxu0 0
    %438 = vmatprep.subr.bf16.mxu0 0
    %439 = vmatpush1.bf16.msra.mxu0 0
    %440 = vmatprep.subr.bf16.mxu0 0
    %441 = vmatpush1.bf16.msra.mxu0 0
    %442 = vmatprep.subr.bf16.mxu0 0
    %443 = vmatpush1.bf16.msra.mxu0 0
    %444 = vmatprep.subr.bf16.mxu0 0
    %445 = vmatpush1.bf16.msra.mxu0 0
    %446 = vmatprep.subr.bf16.mxu0 0
    %447 = vmatpush1.bf16.msra.mxu0 0
    %448 = vmatprep.subr.bf16.mxu0 0
    %449 = vmatpush1.bf16.msra.mxu0 0
    %450 = vmatprep.subr.bf16.mxu0 0
    %451 = vmatpush1.bf16.msra.mxu0 0
    %452 = vmatprep.subr.bf16.mxu0 0
    %453 = vmatpush1.bf16.msra.mxu0 0
    %454 = vmatprep.mubr.bf16.mxu0 0
    %455 = vmatmul.mubr.bf16.gmra.mrb[0].mxu0 %v379
    %v456 = vpop.f32.mrb[0].mxu0
    %v457 = vadd.f32 %v250, %v456
    %v458 = vpop.f32.mrb[0].mxu0
    %v459 = vadd.f32 %v252, %v458
    %v460 = vpop.f32.mrb[0].mxu0
    %v461 = vpop.f32.mrb[0].mxu0
    %462 = vdwg.mxu0
    %463 = vmatprep.subr.bf16.mxu0 %v367
    %464 = vmatpush1.bf16.msra.mxu0 %v366
    %465 = vmatprep.subr.bf16.mxu0 0
    %466 = vmatpush1.bf16.msra.mxu0 0
    %467 = vmatprep.subr.bf16.mxu0 0
    %468 = vmatpush1.bf16.msra.mxu0 0
    %469 = vmatprep.subr.bf16.mxu0 0
    %470 = vmatpush1.bf16.msra.mxu0 0
    %471 = vmatprep.subr.bf16.mxu0 0
    %472 = vmatpush1.bf16.msra.mxu0 0
    %473 = vmatprep.subr.bf16.mxu0 0
    %474 = vmatpush1.bf16.msra.mxu0 0
    %475 = vmatprep.subr.bf16.mxu0 0
    %476 = vmatpush1.bf16.msra.mxu0 0
    %477 = vmatprep.subr.bf16.mxu0 0
    %478 = vmatpush1.bf16.msra.mxu0 0
    %479 = vmatprep.subr.bf16.mxu0 0
    %480 = vmatpush1.bf16.msra.mxu0 0
    %481 = vmatprep.subr.bf16.mxu0 0
    %482 = vmatpush1.bf16.msra.mxu0 0
    %483 = vmatprep.subr.bf16.mxu0 0
    %484 = vmatpush1.bf16.msra.mxu0 0
    %485 = vmatprep.subr.bf16.mxu0 0
    %486 = vmatpush1.bf16.msra.mxu0 0
    %487 = vmatprep.subr.bf16.mxu0 0
    %488 = vmatpush1.bf16.msra.mxu0 0
    %489 = vmatprep.subr.bf16.mxu0 0
    %490 = vmatpush1.bf16.msra.mxu0 0
    %491 = vmatprep.subr.bf16.mxu0 0
    %492 = vmatpush1.bf16.msra.mxu0 0
    %493 = vmatprep.subr.bf16.mxu0 0
    %494 = vmatpush1.bf16.msra.mxu0 0
    %495 = vmatprep.mubr.bf16.mxu0 0
    %496 = vmatmul.mubr.bf16.gmra.mrb[0].mxu0 %v379
    %v497 = vpop.f32.mrb[0].mxu0
    %v498 = vadd.f32 %v291, %v497
    %v499 = vpop.f32.mrb[0].mxu0
    %v500 = vadd.f32 %v293, %v499
    %v501 = vpop.f32.mrb[0].mxu0
    %v502 = vpop.f32.mrb[0].mxu0
    %503 = vdwg.mxu0
    %504 = vmatprep.subr.bf16.mxu0 %v369
    %505 = vmatpush1.bf16.msra.mxu0 %v368
    %506 = vmatprep.subr.bf16.mxu0 0
    %507 = vmatpush1.bf16.msra.mxu0 0
    %508 = vmatprep.subr.bf16.mxu0 0
    %509 = vmatpush1.bf16.msra.mxu0 0
    %510 = vmatprep.subr.bf16.mxu0 0
    %511 = vmatpush1.bf16.msra.mxu0 0
    %512 = vmatprep.subr.bf16.mxu0 0
    %513 = vmatpush1.bf16.msra.mxu0 0
    %514 = vmatprep.subr.bf16.mxu0 0
    %515 = vmatpush1.bf16.msra.mxu0 0
    %516 = vmatprep.subr.bf16.mxu0 0
    %517 = vmatpush1.bf16.msra.mxu0 0
    %518 = vmatprep.subr.bf16.mxu0 0
    %519 = vmatpush1.bf16.msra.mxu0 0
    %520 = vmatprep.subr.bf16.mxu0 0
    %521 = vmatpush1.bf16.msra.mxu0 0
    %522 = vmatprep.subr.bf16.mxu0 0
    %523 = vmatpush1.bf16.msra.mxu0 0
    %524 = vmatprep.subr.bf16.mxu0 0
    %525 = vmatpush1.bf16.msra.mxu0 0
    %526 = vmatprep.subr.bf16.mxu0 0
    %527 = vmatpush1.bf16.msra.mxu0 0
    %528 = vmatprep.subr.bf16.mxu0 0
    %529 = vmatpush1.bf16.msra.mxu0 0
    %530 = vmatprep.subr.bf16.mxu0 0
    %531 = vmatpush1.bf16.msra.mxu0 0
    %532 = vmatprep.subr.bf16.mxu0 0
    %533 = vmatpush1.bf16.msra.mxu0 0
    %534 = vmatprep.subr.bf16.mxu0 0
    %535 = vmatpush1.bf16.msra.mxu0 0
    %536 = vmatprep.mubr.bf16.mxu0 0
    %537 = vmatmul.mubr.bf16.gmra.mrb[0].mxu0 %v379
    %v538 = vpop.f32.mrb[0].mxu0
    %v539 = vadd.f32 %v332, %v538
    %v540 = vpop.f32.mrb[0].mxu0
    %v541 = vadd.f32 %v334, %v540
    %v542 = vpop.f32.mrb[0].mxu0
    %v543 = vpop.f32.mrb[0].mxu0
    %544 = vdwg.mxu0
    %v545 = vld [vmem:[%s4] sm:$0xff]
    %v547 = vlaneseq
    %v548 = vshrl.u32 %v547, 7
    %v549 = vsub.s32 0, %v548
    %v550 = vrot.slane %v545, %v549
    %v551 = vlaneseq
    %v552 = vshrl.u32 %v551, 7
    %v553 = vsub.s32 1, %v552
    %v554 = vrot.slane %v545, %v553
    %v555 = vlaneseq
    %v556 = vshrl.u32 %v555, 7
    %v557 = vsub.s32 2, %v556
    %v558 = vrot.slane %v545, %v557
    %v559 = vlaneseq
    %v560 = vshrl.u32 %v559, 7
    %v561 = vsub.s32 3, %v560
    %v562 = vrot.slane %v545, %v561
    %v563 = vlaneseq
    %v564 = vshrl.u32 %v563, 7
    %v565 = vsub.s32 4, %v564
    %v566 = vrot.slane %v545, %v565
    %v567 = vlaneseq
    %v568 = vshrl.u32 %v567, 7
    %v569 = vsub.s32 5, %v568
    %v570 = vrot.slane %v545, %v569
    %v571 = vlaneseq
    %v572 = vshrl.u32 %v571, 7
    %v573 = vsub.s32 6, %v572
    %v574 = vrot.slane %v545, %v573
    %v575 = vlaneseq
    %v576 = vshrl.u32 %v575, 7
    %v577 = vsub.s32 7, %v576
    %v578 = vrot.slane %v545, %v577
    %v587 = vadd.f32 %v416, %v550
    %v588 = vadd.f32 %v418, %v554
    %v589 = vadd.f32 %v457, %v558
    %v590 = vadd.f32 %v459, %v562
    %v591 = vadd.f32 %v498, %v566
    %v592 = vadd.f32 %v500, %v570
    %v593 = vadd.f32 %v539, %v574
    %v594 = vadd.f32 %v541, %v578
    %v595 = vmul.f32 %v587, 0.2
    %v596 = vmul.f32 %v588, 0.2
    %v597 = vmul.f32 %v589, 0.2
    %v598 = vmul.f32 %v590, 0.2
    %v599 = vmul.f32 %v591, 0.2
    %v600 = vmul.f32 %v592, 0.2
    %v601 = vmul.f32 %v593, 0.2
    %v602 = vmul.f32 %v594, 0.2
    %v603 = vmax.f32 %v587, %v595
    %v604 = vmax.f32 %v588, %v596
    %v605 = vmax.f32 %v589, %v597
    %v606 = vmax.f32 %v590, %v598
    %v607 = vmax.f32 %v591, %v599
    %v608 = vmax.f32 %v592, %v600
    %v609 = vmax.f32 %v593, %v601
    %v610 = vmax.f32 %v594, %v602
    %v611 = vpack.c.bf16 %v603, %v603
    %v612 = vpack.c.bf16 %v604, %v604
    %v613 = vpack.c.bf16 %v605, %v605
    %v614 = vpack.c.bf16 %v606, %v606
    %v615 = vpack.c.bf16 %v607, %v607
    %v616 = vpack.c.bf16 %v608, %v608
    %v617 = vpack.c.bf16 %v609, %v609
    %v618 = vpack.c.bf16 %v610, %v610
    %v619 = vld [vmem:[#allocation10] sm:$0xff]
    %v620 = vld [vmem:[#allocation10 + $0x8] sm:$0xff]
    %v621 = vld [vmem:[#allocation10 + $0x10] sm:$0xff]
    %v622 = vld [vmem:[#allocation10 + $0x18] sm:$0xff]
    %v623 = vld [vmem:[#allocation10 + $0x20] sm:$0xff]
    %v624 = vld [vmem:[#allocation10 + $0x28] sm:$0xff]
    %v625 = vld [vmem:[#allocation10 + $0x30] sm:$0xff]
    %v626 = vld [vmem:[#allocation10 + $0x38] sm:$0xff]
    %v627 = vld [vmem:[#allocation10 + $0x40] sm:$0xff]
    %v628 = vld [vmem:[#allocation10 + $0x48] sm:$0xff]
    %v629 = vld [vmem:[#allocation10 + $0x50] sm:$0xff]
    %v630 = vld [vmem:[#allocation10 + $0x58] sm:$0xff]
    %v631 = vld [vmem:[#allocation10 + $0x60] sm:$0xff]
    %v632 = vld [vmem:[#allocation10 + $0x68] sm:$0xff]
    %v633 = vld [vmem:[#allocation10 + $0x70] sm:$0xff]
    %v634 = vld [vmem:[#allocation10 + $0x78] sm:$0xff]
    %v635 = vld [vmem:[#allocation10 + $0x80] sm:$0xff]
    %v636 = vld [vmem:[#allocation10 + $0x88] sm:$0xff]
    %v637 = vld [vmem:[#allocation10 + $0x90] sm:$0xff]
    %v638 = vld [vmem:[#allocation10 + $0x98] sm:$0xff]
    %v639 = vld [vmem:[#allocation10 + $0xa0] sm:$0xff]
    %v640 = vld [vmem:[#allocation10 + $0xa8] sm:$0xff]
    %v641 = vld [vmem:[#allocation10 + $0xb0] sm:$0xff]
    %v642 = vld [vmem:[#allocation10 + $0xb8] sm:$0xff]
    %v643 = vld [vmem:[#allocation10 + $0xc0] sm:$0xff]
    %v644 = vld [vmem:[#allocation10 + $0xc8] sm:$0xff]
    %v645 = vld [vmem:[#allocation10 + $0xd0] sm:$0xff]
    %v646 = vld [vmem:[#allocation10 + $0xd8] sm:$0xff]
    %v647 = vld [vmem:[#allocation10 + $0xe0] sm:$0xff]
    %v648 = vld [vmem:[#allocation10 + $0xe8] sm:$0xff]
    %v649 = vld [vmem:[#allocation10 + $0xf0] sm:$0xff]
    %v650 = vld [vmem:[#allocation10 + $0xf8] sm:$0xff]
    %v651 = vld [vmem:[#allocation10 + $0x100] sm:$0xff]
    %v652 = vld [vmem:[#allocation10 + $0x108] sm:$0xff]
    %v653 = vld [vmem:[#allocation10 + $0x110] sm:$0xff]
    %v654 = vld [vmem:[#allocation10 + $0x118] sm:$0xff]
    %v655 = vld [vmem:[#allocation10 + $0x120] sm:$0xff]
    %v656 = vld [vmem:[#allocation10 + $0x128] sm:$0xff]
    %v657 = vld [vmem:[#allocation10 + $0x130] sm:$0xff]
    %v658 = vld [vmem:[#allocation10 + $0x138] sm:$0xff]
    %v659 = vld [vmem:[#allocation10 + $0x140] sm:$0xff]
    %v660 = vld [vmem:[#allocation10 + $0x148] sm:$0xff]
    %v661 = vld [vmem:[#allocation10 + $0x150] sm:$0xff]
    %v662 = vld [vmem:[#allocation10 + $0x158] sm:$0xff]
    %v663 = vld [vmem:[#allocation10 + $0x160] sm:$0xff]
    %v664 = vld [vmem:[#allocation10 + $0x168] sm:$0xff]
    %v665 = vld [vmem:[#allocation10 + $0x170] sm:$0xff]
    %v666 = vld [vmem:[#allocation10 + $0x178] sm:$0xff]
    %v667 = vld [vmem:[#allocation10 + $0x180] sm:$0xff]
    %v668 = vld [vmem:[#allocation10 + $0x188] sm:$0xff]
    %v669 = vld [vmem:[#allocation10 + $0x190] sm:$0xff]
    %v670 = vld [vmem:[#allocation10 + $0x198] sm:$0xff]
    %v671 = vld [vmem:[#allocation10 + $0x1a0] sm:$0xff]
    %v672 = vld [vmem:[#allocation10 + $0x1a8] sm:$0xff]
    %v673 = vld [vmem:[#allocation10 + $0x1b0] sm:$0xff]
    %v674 = vld [vmem:[#allocation10 + $0x1b8] sm:$0xff]
    %v675 = vld [vmem:[#allocation10 + $0x1c0] sm:$0xff]
    %v676 = vld [vmem:[#allocation10 + $0x1c8] sm:$0xff]
    %v677 = vld [vmem:[#allocation10 + $0x1d0] sm:$0xff]
    %v678 = vld [vmem:[#allocation10 + $0x1d8] sm:$0xff]
    %v679 = vld [vmem:[#allocation10 + $0x1e0] sm:$0xff]
    %v680 = vld [vmem:[#allocation10 + $0x1e8] sm:$0xff]
    %v681 = vld [vmem:[#allocation10 + $0x1f0] sm:$0xff]
    %v682 = vld [vmem:[#allocation10 + $0x1f8] sm:$0xff]
    %v683 = vld [vmem:[#allocation10 + $0x200] sm:$0xff]
    %v684 = vld [vmem:[#allocation10 + $0x208] sm:$0xff]
    %v685 = vld [vmem:[#allocation10 + $0x210] sm:$0xff]
    %v686 = vld [vmem:[#allocation10 + $0x218] sm:$0xff]
    %v687 = vld [vmem:[#allocation10 + $0x220] sm:$0xff]
    %v688 = vld [vmem:[#allocation10 + $0x228] sm:$0xff]
    %v689 = vld [vmem:[#allocation10 + $0x230] sm:$0xff]
    %v690 = vld [vmem:[#allocation10 + $0x238] sm:$0xff]
    %v691 = vld [vmem:[#allocation10 + $0x240] sm:$0xff]
    %v692 = vld [vmem:[#allocation10 + $0x248] sm:$0xff]
    %v693 = vld [vmem:[#allocation10 + $0x250] sm:$0xff]
    %v694 = vld [vmem:[#allocation10 + $0x258] sm:$0xff]
    %v695 = vld [vmem:[#allocation10 + $0x260] sm:$0xff]
    %v696 = vld [vmem:[#allocation10 + $0x268] sm:$0xff]
    %v697 = vld [vmem:[#allocation10 + $0x270] sm:$0xff]
    %v698 = vld [vmem:[#allocation10 + $0x278] sm:$0xff]
    %v699 = vld [vmem:[#allocation10 + $0x280] sm:$0xff]
    %v700 = vld [vmem:[#allocation10 + $0x288] sm:$0xff]
    %v701 = vld [vmem:[#allocation10 + $0x290] sm:$0xff]
    %v702 = vld [vmem:[#allocation10 + $0x298] sm:$0xff]
    %v703 = vld [vmem:[#allocation10 + $0x2a0] sm:$0xff]
    %v704 = vld [vmem:[#allocation10 + $0x2a8] sm:$0xff]
    %v705 = vld [vmem:[#allocation10 + $0x2b0] sm:$0xff]
    %v706 = vld [vmem:[#allocation10 + $0x2b8] sm:$0xff]
    %v707 = vld [vmem:[#allocation10 + $0x2c0] sm:$0xff]
    %v708 = vld [vmem:[#allocation10 + $0x2c8] sm:$0xff]
    %v709 = vld [vmem:[#allocation10 + $0x2d0] sm:$0xff]
    %v710 = vld [vmem:[#allocation10 + $0x2d8] sm:$0xff]
    %v711 = vld [vmem:[#allocation10 + $0x2e0] sm:$0xff]
    %v712 = vld [vmem:[#allocation10 + $0x2e8] sm:$0xff]
    %v713 = vld [vmem:[#allocation10 + $0x2f0] sm:$0xff]
    %v714 = vld [vmem:[#allocation10 + $0x2f8] sm:$0xff]
    %v715 = vld [vmem:[#allocation10 + $0x300] sm:$0xff]
    %v716 = vld [vmem:[#allocation10 + $0x308] sm:$0xff]
    %v717 = vld [vmem:[#allocation10 + $0x310] sm:$0xff]
    %v718 = vld [vmem:[#allocation10 + $0x318] sm:$0xff]
    %v719 = vld [vmem:[#allocation10 + $0x320] sm:$0xff]
    %v720 = vld [vmem:[#allocation10 + $0x328] sm:$0xff]
    %v721 = vld [vmem:[#allocation10 + $0x330] sm:$0xff]
    %v722 = vld [vmem:[#allocation10 + $0x338] sm:$0xff]
    %v723 = vld [vmem:[#allocation10 + $0x340] sm:$0xff]
    %v724 = vld [vmem:[#allocation10 + $0x348] sm:$0xff]
    %v725 = vld [vmem:[#allocation10 + $0x350] sm:$0xff]
    %v726 = vld [vmem:[#allocation10 + $0x358] sm:$0xff]
    %v727 = vld [vmem:[#allocation10 + $0x360] sm:$0xff]
    %v728 = vld [vmem:[#allocation10 + $0x368] sm:$0xff]
    %v729 = vld [vmem:[#allocation10 + $0x370] sm:$0xff]
    %v730 = vld [vmem:[#allocation10 + $0x378] sm:$0xff]
    %v731 = vld [vmem:[#allocation10 + $0x380] sm:$0xff]
    %v732 = vld [vmem:[#allocation10 + $0x388] sm:$0xff]
    %v733 = vld [vmem:[#allocation10 + $0x390] sm:$0xff]
    %v734 = vld [vmem:[#allocation10 + $0x398] sm:$0xff]
    %v735 = vld [vmem:[#allocation10 + $0x3a0] sm:$0xff]
    %v736 = vld [vmem:[#allocation10 + $0x3a8] sm:$0xff]
    %v737 = vld [vmem:[#allocation10 + $0x3b0] sm:$0xff]
    %v738 = vld [vmem:[#allocation10 + $0x3b8] sm:$0xff]
    %v739 = vld [vmem:[#allocation10 + $0x3c0] sm:$0xff]
    %v740 = vld [vmem:[#allocation10 + $0x3c8] sm:$0xff]
    %v741 = vld [vmem:[#allocation10 + $0x3d0] sm:$0xff]
    %v742 = vld [vmem:[#allocation10 + $0x3d8] sm:$0xff]
    %v743 = vld [vmem:[#allocation10 + $0x3e0] sm:$0xff]
    %v744 = vld [vmem:[#allocation10 + $0x3e8] sm:$0xff]
    %v745 = vld [vmem:[#allocation10 + $0x3f0] sm:$0xff]
    %v746 = vld [vmem:[#allocation10 + $0x3f8] sm:$0xff]
    %v747 = vld [vmem:[%s6] sm:$0x3]
    %v749 = vlaneseq
    %v750 = vshrl.u32 %v749, 7
    %v751 = vsub.s32 0, %v750
    %v752 = vrot.slane %v747, %v751
    %v753 = vlaneseq
    %v754 = vshrl.u32 %v753, 7
    %v755 = vsub.s32 1, %v754
    %v756 = vrot.slane %v747, %v755
    %v887 = vunpack.c.l.b16 %v619
    %v888 = vunpack.c.h.b16 %v619
    %v889 = vunpack.c.l.b16 %v620
    %v890 = vunpack.c.h.b16 %v620
    %v891 = vunpack.c.l.b16 %v621
    %v892 = vunpack.c.h.b16 %v621
    %v893 = vunpack.c.l.b16 %v622
    %v894 = vunpack.c.h.b16 %v622
    %v895 = vunpack.c.l.b16 %v623
    %v896 = vunpack.c.h.b16 %v623
    %v897 = vunpack.c.l.b16 %v624
    %v898 = vunpack.c.h.b16 %v624
    %v899 = vunpack.c.l.b16 %v625
    %v900 = vunpack.c.h.b16 %v625
    %v901 = vunpack.c.l.b16 %v626
    %v902 = vunpack.c.h.b16 %v626
    %v903 = vunpack.c.l.b16 %v627
    %v904 = vunpack.c.h.b16 %v627
    %v905 = vunpack.c.l.b16 %v628
    %v906 = vunpack.c.h.b16 %v628
    %v907 = vunpack.c.l.b16 %v629
    %v908 = vunpack.c.h.b16 %v629
    %v909 = vunpack.c.l.b16 %v630
    %v910 = vunpack.c.h.b16 %v630
    %v911 = vunpack.c.l.b16 %v631
    %v912 = vunpack.c.h.b16 %v631
    %v913 = vunpack.c.l.b16 %v632
    %v914 = vunpack.c.h.b16 %v632
    %v915 = vunpack.c.l.b16 %v633
    %v916 = vunpack.c.h.b16 %v633
    %v917 = vunpack.c.l.b16 %v634
    %v918 = vunpack.c.h.b16 %v634
    %v919 = vunpack.c.l.b16 %v635
    %v920 = vunpack.c.h.b16 %v635
    %v921 = vunpack.c.l.b16 %v636
    %v922 = vunpack.c.h.b16 %v636
    %v923 = vunpack.c.l.b16 %v637
    %v924 = vunpack.c.h.b16 %v637
    %v925 = vunpack.c.l.b16 %v638
    %v926 = vunpack.c.h.b16 %v638
    %v927 = vunpack.c.l.b16 %v639
    %v928 = vunpack.c.h.b16 %v639
    %v929 = vunpack.c.l.b16 %v640
    %v930 = vunpack.c.h.b16 %v640
    %v931 = vunpack.c.l.b16 %v641
    %v932 = vunpack.c.h.b16 %v641
    %v933 = vunpack.c.l.b16 %v642
    %v934 = vunpack.c.h.b16 %v642
    %v935 = vunpack.c.l.b16 %v643
    %v936 = vunpack.c.h.b16 %v643
    %v937 = vunpack.c.l.b16 %v644
    %v938 = vunpack.c.h.b16 %v644
    %v939 = vunpack.c.l.b16 %v645
    %v940 = vunpack.c.h.b16 %v645
    %v941 = vunpack.c.l.b16 %v646
    %v942 = vunpack.c.h.b16 %v646
    %v943 = vunpack.c.l.b16 %v647
    %v944 = vunpack.c.h.b16 %v647
    %v945 = vunpack.c.l.b16 %v648
    %v946 = vunpack.c.h.b16 %v648
    %v947 = vunpack.c.l.b16 %v649
    %v948 = vunpack.c.h.b16 %v649
    %v949 = vunpack.c.l.b16 %v650
    %v950 = vunpack.c.h.b16 %v650
    %v951 = vunpack.c.l.b16 %v651
    %v952 = vunpack.c.h.b16 %v651
    %v953 = vunpack.c.l.b16 %v652
    %v954 = vunpack.c.h.b16 %v652
    %v955 = vunpack.c.l.b16 %v653
    %v956 = vunpack.c.h.b16 %v653
    %v957 = vunpack.c.l.b16 %v654
    %v958 = vunpack.c.h.b16 %v654
    %v959 = vunpack.c.l.b16 %v655
    %v960 = vunpack.c.h.b16 %v655
    %v961 = vunpack.c.l.b16 %v656
    %v962 = vunpack.c.h.b16 %v656
    %v963 = vunpack.c.l.b16 %v657
    %v964 = vunpack.c.h.b16 %v657
    %v965 = vunpack.c.l.b16 %v658
    %v966 = vunpack.c.h.b16 %v658
    %v967 = vunpack.c.l.b16 %v659
    %v968 = vunpack.c.h.b16 %v659
    %v969 = vunpack.c.l.b16 %v660
    %v970 = vunpack.c.h.b16 %v660
    %v971 = vunpack.c.l.b16 %v661
    %v972 = vunpack.c.h.b16 %v661
    %v973 = vunpack.c.l.b16 %v662
    %v974 = vunpack.c.h.b16 %v662
    %v975 = vunpack.c.l.b16 %v663
    %v976 = vunpack.c.h.b16 %v663
    %v977 = vunpack.c.l.b16 %v664
    %v978 = vunpack.c.h.b16 %v664
    %v979 = vunpack.c.l.b16 %v665
    %v980 = vunpack.c.h.b16 %v665
    %v981 = vunpack.c.l.b16 %v666
    %v982 = vunpack.c.h.b16 %v666
    %v983 = vunpack.c.l.b16 %v667
    %v984 = vunpack.c.h.b16 %v667
    %v985 = vunpack.c.l.b16 %v668
    %v986 = vunpack.c.h.b16 %v668
    %v987 = vunpack.c.l.b16 %v669
    %v988 = vunpack.c.h.b16 %v669
    %v989 = vunpack.c.l.b16 %v670
    %v990 = vunpack.c.h.b16 %v670
    %v991 = vunpack.c.l.b16 %v671
    %v992 = vunpack.c.h.b16 %v671
    %v993 = vunpack.c.l.b16 %v672
    %v994 = vunpack.c.h.b16 %v672
    %v995 = vunpack.c.l.b16 %v673
    %v996 = vunpack.c.h.b16 %v673
    %v997 = vunpack.c.l.b16 %v674
    %v998 = vunpack.c.h.b16 %v674
    %v999 = vunpack.c.l.b16 %v675
    %v1000 = vunpack.c.h.b16 %v675
    %v1001 = vunpack.c.l.b16 %v676
    %v1002 = vunpack.c.h.b16 %v676
    %v1003 = vunpack.c.l.b16 %v677
    %v1004 = vunpack.c.h.b16 %v677
    %v1005 = vunpack.c.l.b16 %v678
    %v1006 = vunpack.c.h.b16 %v678
    %v1007 = vunpack.c.l.b16 %v679
    %v1008 = vunpack.c.h.b16 %v679
    %v1009 = vunpack.c.l.b16 %v680
    %v1010 = vunpack.c.h.b16 %v680
    %v1011 = vunpack.c.l.b16 %v681
    %v1012 = vunpack.c.h.b16 %v681
    %v1013 = vunpack.c.l.b16 %v682
    %v1014 = vunpack.c.h.b16 %v682
    %v1015 = vunpack.c.l.b16 %v683
    %v1016 = vunpack.c.h.b16 %v683
    %v1017 = vunpack.c.l.b16 %v684
    %v1018 = vunpack.c.h.b16 %v684
    %v1019 = vunpack.c.l.b16 %v685
    %v1020 = vunpack.c.h.b16 %v685
    %v1021 = vunpack.c.l.b16 %v686
    %v1022 = vunpack.c.h.b16 %v686
    %v1023 = vunpack.c.l.b16 %v687
    %v1024 = vunpack.c.h.b16 %v687
    %v1025 = vunpack.c.l.b16 %v688
    %v1026 = vunpack.c.h.b16 %v688
    %v1027 = vunpack.c.l.b16 %v689
    %v1028 = vunpack.c.h.b16 %v689
    %v1029 = vunpack.c.l.b16 %v690
    %v1030 = vunpack.c.h.b16 %v690
    %v1031 = vunpack.c.l.b16 %v691
    %v1032 = vunpack.c.h.b16 %v691
    %v1033 = vunpack.c.l.b16 %v692
    %v1034 = vunpack.c.h.b16 %v692
    %v1035 = vunpack.c.l.b16 %v693
    %v1036 = vunpack.c.h.b16 %v693
    %v1037 = vunpack.c.l.b16 %v694
    %v1038 = vunpack.c.h.b16 %v694
    %v1039 = vunpack.c.l.b16 %v695
    %v1040 = vunpack.c.h.b16 %v695
    %v1041 = vunpack.c.l.b16 %v696
    %v1042 = vunpack.c.h.b16 %v696
    %v1043 = vunpack.c.l.b16 %v697
    %v1044 = vunpack.c.h.b16 %v697
    %v1045 = vunpack.c.l.b16 %v698
    %v1046 = vunpack.c.h.b16 %v698
    %v1047 = vunpack.c.l.b16 %v699
    %v1048 = vunpack.c.h.b16 %v699
    %v1049 = vunpack.c.l.b16 %v700
    %v1050 = vunpack.c.h.b16 %v700
    %v1051 = vunpack.c.l.b16 %v701
    %v1052 = vunpack.c.h.b16 %v701
    %v1053 = vunpack.c.l.b16 %v702
    %v1054 = vunpack.c.h.b16 %v702
    %v1055 = vunpack.c.l.b16 %v703
    %v1056 = vunpack.c.h.b16 %v703
    %v1057 = vunpack.c.l.b16 %v704
    %v1058 = vunpack.c.h.b16 %v704
    %v1059 = vunpack.c.l.b16 %v705
    %v1060 = vunpack.c.h.b16 %v705
    %v1061 = vunpack.c.l.b16 %v706
    %v1062 = vunpack.c.h.b16 %v706
    %v1063 = vunpack.c.l.b16 %v707
    %v1064 = vunpack.c.h.b16 %v707
    %v1065 = vunpack.c.l.b16 %v708
    %v1066 = vunpack.c.h.b16 %v708
    %v1067 = vunpack.c.l.b16 %v709
    %v1068 = vunpack.c.h.b16 %v709
    %v1069 = vunpack.c.l.b16 %v710
    %v1070 = vunpack.c.h.b16 %v710
    %v1071 = vunpack.c.l.b16 %v711
    %v1072 = vunpack.c.h.b16 %v711
    %v1073 = vunpack.c.l.b16 %v712
    %v1074 = vunpack.c.h.b16 %v712
    %v1075 = vunpack.c.l.b16 %v713
    %v1076 = vunpack.c.h.b16 %v713
    %v1077 = vunpack.c.l.b16 %v714
    %v1078 = vunpack.c.h.b16 %v714
    %v1079 = vunpack.c.l.b16 %v715
    %v1080 = vunpack.c.h.b16 %v715
    %v1081 = vunpack.c.l.b16 %v716
    %v1082 = vunpack.c.h.b16 %v716
    %v1083 = vunpack.c.l.b16 %v717
    %v1084 = vunpack.c.h.b16 %v717
    %v1085 = vunpack.c.l.b16 %v718
    %v1086 = vunpack.c.h.b16 %v718
    %v1087 = vunpack.c.l.b16 %v719
    %v1088 = vunpack.c.h.b16 %v719
    %v1089 = vunpack.c.l.b16 %v720
    %v1090 = vunpack.c.h.b16 %v720
    %v1091 = vunpack.c.l.b16 %v721
    %v1092 = vunpack.c.h.b16 %v721
    %v1093 = vunpack.c.l.b16 %v722
    %v1094 = vunpack.c.h.b16 %v722
    %v1095 = vunpack.c.l.b16 %v723
    %v1096 = vunpack.c.h.b16 %v723
    %v1097 = vunpack.c.l.b16 %v724
    %v1098 = vunpack.c.h.b16 %v724
    %v1099 = vunpack.c.l.b16 %v725
    %v1100 = vunpack.c.h.b16 %v725
    %v1101 = vunpack.c.l.b16 %v726
    %v1102 = vunpack.c.h.b16 %v726
    %v1103 = vunpack.c.l.b16 %v727
    %v1104 = vunpack.c.h.b16 %v727
    %v1105 = vunpack.c.l.b16 %v728
    %v1106 = vunpack.c.h.b16 %v728
    %v1107 = vunpack.c.l.b16 %v729
    %v1108 = vunpack.c.h.b16 %v729
    %v1109 = vunpack.c.l.b16 %v730
    %v1110 = vunpack.c.h.b16 %v730
    %v1111 = vunpack.c.l.b16 %v731
    %v1112 = vunpack.c.h.b16 %v731
    %v1113 = vunpack.c.l.b16 %v732
    %v1114 = vunpack.c.h.b16 %v732
    %v1115 = vunpack.c.l.b16 %v733
    %v1116 = vunpack.c.h.b16 %v733
    %v1117 = vunpack.c.l.b16 %v734
    %v1118 = vunpack.c.h.b16 %v734
    %v1119 = vunpack.c.l.b16 %v735
    %v1120 = vunpack.c.h.b16 %v735
    %v1121 = vunpack.c.l.b16 %v736
    %v1122 = vunpack.c.h.b16 %v736
    %v1123 = vunpack.c.l.b16 %v737
    %v1124 = vunpack.c.h.b16 %v737
    %v1125 = vunpack.c.l.b16 %v738
    %v1126 = vunpack.c.h.b16 %v738
    %v1127 = vunpack.c.l.b16 %v739
    %v1128 = vunpack.c.h.b16 %v739
    %v1129 = vunpack.c.l.b16 %v740
    %v1130 = vunpack.c.h.b16 %v740
    %v1131 = vunpack.c.l.b16 %v741
    %v1132 = vunpack.c.h.b16 %v741
    %v1133 = vunpack.c.l.b16 %v742
    %v1134 = vunpack.c.h.b16 %v742
    %v1135 = vunpack.c.l.b16 %v743
    %v1136 = vunpack.c.h.b16 %v743
    %v1137 = vunpack.c.l.b16 %v744
    %v1138 = vunpack.c.h.b16 %v744
    %v1139 = vunpack.c.l.b16 %v745
    %v1140 = vunpack.c.h.b16 %v745
    %v1141 = vunpack.c.l.b16 %v746
    %v1142 = vunpack.c.h.b16 %v746
    %v1143 = vpack.c.b16 %v889, %v887
    %v1144 = vpack.c.b16 %v890, %v888
    %v1145 = vpack.c.b16 %v893, %v891
    %v1146 = vpack.c.b16 %v894, %v892
    %v1147 = vpack.c.b16 %v897, %v895
    %v1148 = vpack.c.b16 %v898, %v896
    %v1149 = vpack.c.b16 %v901, %v899
    %v1150 = vpack.c.b16 %v902, %v900
    %v1151 = vpack.c.b16 %v905, %v903
    %v1152 = vpack.c.b16 %v906, %v904
    %v1153 = vpack.c.b16 %v909, %v907
    %v1154 = vpack.c.b16 %v910, %v908
    %v1155 = vpack.c.b16 %v913, %v911
    %v1156 = vpack.c.b16 %v914, %v912
    %v1157 = vpack.c.b16 %v917, %v915
    %v1158 = vpack.c.b16 %v918, %v916
    %v1159 = vpack.c.b16 %v921, %v919
    %v1160 = vpack.c.b16 %v922, %v920
    %v1161 = vpack.c.b16 %v925, %v923
    %v1162 = vpack.c.b16 %v926, %v924
    %v1163 = vpack.c.b16 %v929, %v927
    %v1164 = vpack.c.b16 %v930, %v928
    %v1165 = vpack.c.b16 %v933, %v931
    %v1166 = vpack.c.b16 %v934, %v932
    %v1167 = vpack.c.b16 %v937, %v935
    %v1168 = vpack.c.b16 %v938, %v936
    %v1169 = vpack.c.b16 %v941, %v939
    %v1170 = vpack.c.b16 %v942, %v940
    %v1171 = vpack.c.b16 %v945, %v943
    %v1172 = vpack.c.b16 %v946, %v944
    %v1173 = vpack.c.b16 %v949, %v947
    %v1174 = vpack.c.b16 %v950, %v948
    %v1175 = vpack.c.b16 %v953, %v951
    %v1176 = vpack.c.b16 %v954, %v952
    %v1177 = vpack.c.b16 %v957, %v955
    %v1178 = vpack.c.b16 %v958, %v956
    %v1179 = vpack.c.b16 %v961, %v959
    %v1180 = vpack.c.b16 %v962, %v960
    %v1181 = vpack.c.b16 %v965, %v963
    %v1182 = vpack.c.b16 %v966, %v964
    %v1183 = vpack.c.b16 %v969, %v967
    %v1184 = vpack.c.b16 %v970, %v968
    %v1185 = vpack.c.b16 %v973, %v971
    %v1186 = vpack.c.b16 %v974, %v972
    %v1187 = vpack.c.b16 %v977, %v975
    %v1188 = vpack.c.b16 %v978, %v976
    %v1189 = vpack.c.b16 %v981, %v979
    %v1190 = vpack.c.b16 %v982, %v980
    %v1191 = vpack.c.b16 %v985, %v983
    %v1192 = vpack.c.b16 %v986, %v984
    %v1193 = vpack.c.b16 %v989, %v987
    %v1194 = vpack.c.b16 %v990, %v988
    %v1195 = vpack.c.b16 %v993, %v991
    %v1196 = vpack.c.b16 %v994, %v992
    %v1197 = vpack.c.b16 %v997, %v995
    %v1198 = vpack.c.b16 %v998, %v996
    %v1199 = vpack.c.b16 %v1001, %v999
    %v1200 = vpack.c.b16 %v1002, %v1000
    %v1201 = vpack.c.b16 %v1005, %v1003
    %v1202 = vpack.c.b16 %v1006, %v1004
    %v1203 = vpack.c.b16 %v1009, %v1007
    %v1204 = vpack.c.b16 %v1010, %v1008
    %v1205 = vpack.c.b16 %v1013, %v1011
    %v1206 = vpack.c.b16 %v1014, %v1012
    %v1207 = vpack.c.b16 %v1017, %v1015
    %v1208 = vpack.c.b16 %v1018, %v1016
    %v1209 = vpack.c.b16 %v1021, %v1019
    %v1210 = vpack.c.b16 %v1022, %v1020
    %v1211 = vpack.c.b16 %v1025, %v1023
    %v1212 = vpack.c.b16 %v1026, %v1024
    %v1213 = vpack.c.b16 %v1029, %v1027
    %v1214 = vpack.c.b16 %v1030, %v1028
    %v1215 = vpack.c.b16 %v1033, %v1031
    %v1216 = vpack.c.b16 %v1034, %v1032
    %v1217 = vpack.c.b16 %v1037, %v1035
    %v1218 = vpack.c.b16 %v1038, %v1036
    %v1219 = vpack.c.b16 %v1041, %v1039
    %v1220 = vpack.c.b16 %v1042, %v1040
    %v1221 = vpack.c.b16 %v1045, %v1043
    %v1222 = vpack.c.b16 %v1046, %v1044
    %v1223 = vpack.c.b16 %v1049, %v1047
    %v1224 = vpack.c.b16 %v1050, %v1048
    %v1225 = vpack.c.b16 %v1053, %v1051
    %v1226 = vpack.c.b16 %v1054, %v1052
    %v1227 = vpack.c.b16 %v1057, %v1055
    %v1228 = vpack.c.b16 %v1058, %v1056
    %v1229 = vpack.c.b16 %v1061, %v1059
    %v1230 = vpack.c.b16 %v1062, %v1060
    %v1231 = vpack.c.b16 %v1065, %v1063
    %v1232 = vpack.c.b16 %v1066, %v1064
    %v1233 = vpack.c.b16 %v1069, %v1067
    %v1234 = vpack.c.b16 %v1070, %v1068
    %v1235 = vpack.c.b16 %v1073, %v1071
    %v1236 = vpack.c.b16 %v1074, %v1072
    %v1237 = vpack.c.b16 %v1077, %v1075
    %v1238 = vpack.c.b16 %v1078, %v1076
    %v1239 = vpack.c.b16 %v1081, %v1079
    %v1240 = vpack.c.b16 %v1082, %v1080
    %v1241 = vpack.c.b16 %v1085, %v1083
    %v1242 = vpack.c.b16 %v1086, %v1084
    %v1243 = vpack.c.b16 %v1089, %v1087
    %v1244 = vpack.c.b16 %v1090, %v1088
    %v1245 = vpack.c.b16 %v1093, %v1091
    %v1246 = vpack.c.b16 %v1094, %v1092
    %v1247 = vpack.c.b16 %v1097, %v1095
    %v1248 = vpack.c.b16 %v1098, %v1096
    %v1249 = vpack.c.b16 %v1101, %v1099
    %v1250 = vpack.c.b16 %v1102, %v1100
    %v1251 = vpack.c.b16 %v1105, %v1103
    %v1252 = vpack.c.b16 %v1106, %v1104
    %v1253 = vpack.c.b16 %v1109, %v1107
    %v1254 = vpack.c.b16 %v1110, %v1108
    %v1255 = vpack.c.b16 %v1113, %v1111
    %v1256 = vpack.c.b16 %v1114, %v1112
    %v1257 = vpack.c.b16 %v1117, %v1115
    %v1258 = vpack.c.b16 %v1118, %v1116
    %v1259 = vpack.c.b16 %v1121, %v1119
    %v1260 = vpack.c.b16 %v1122, %v1120
    %v1261 = vpack.c.b16 %v1125, %v1123
    %v1262 = vpack.c.b16 %v1126, %v1124
    %v1263 = vpack.c.b16 %v1129, %v1127
    %v1264 = vpack.c.b16 %v1130, %v1128
    %v1265 = vpack.c.b16 %v1133, %v1131
    %v1266 = vpack.c.b16 %v1134, %v1132
    %v1267 = vpack.c.b16 %v1137, %v1135
    %v1268 = vpack.c.b16 %v1138, %v1136
    %v1269 = vpack.c.b16 %v1141, %v1139
    %v1270 = vpack.c.b16 %v1142, %v1140
    %1399 = vmatprep.subr.bf16.mxu0 %v1144
    %1400 = vmatpush1.bf16.msra.mxu0 %v1143
    %1401 = vmatprep.subr.bf16.mxu0 %v1146
    %1402 = vmatpush1.bf16.msra.mxu0 %v1145
    %1403 = vmatprep.subr.bf16.mxu0 %v1148
    %1404 = vmatpush1.bf16.msra.mxu0 %v1147
    %1405 = vmatprep.subr.bf16.mxu0 %v1150
    %1406 = vmatpush1.bf16.msra.mxu0 %v1149
    %1407 = vmatprep.subr.bf16.mxu0 %v1152
    %1408 = vmatpush1.bf16.msra.mxu0 %v1151
    %1409 = vmatprep.subr.bf16.mxu0 %v1154
    %1410 = vmatpush1.bf16.msra.mxu0 %v1153
    %1411 = vmatprep.subr.bf16.mxu0 %v1156
    %1412 = vmatpush1.bf16.msra.mxu0 %v1155
    %1413 = vmatprep.subr.bf16.mxu0 %v1158
    %1414 = vmatpush1.bf16.msra.mxu0 %v1157
    %1415 = vmatprep.subr.bf16.mxu0 %v1160
    %1416 = vmatpush1.bf16.msra.mxu0 %v1159
    %1417 = vmatprep.subr.bf16.mxu0 %v1162
    %1418 = vmatpush1.bf16.msra.mxu0 %v1161
    %1419 = vmatprep.subr.bf16.mxu0 %v1164
    %1420 = vmatpush1.bf16.msra.mxu0 %v1163
    %1421 = vmatprep.subr.bf16.mxu0 %v1166
    %1422 = vmatpush1.bf16.msra.mxu0 %v1165
    %1423 = vmatprep.subr.bf16.mxu0 %v1168
    %1424 = vmatpush1.bf16.msra.mxu0 %v1167
    %1425 = vmatprep.subr.bf16.mxu0 %v1170
    %1426 = vmatpush1.bf16.msra.mxu0 %v1169
    %1427 = vmatprep.subr.bf16.mxu0 %v1172
    %1428 = vmatpush1.bf16.msra.mxu0 %v1171
    %1429 = vmatprep.subr.bf16.mxu0 %v1174
    %1430 = vmatpush1.bf16.msra.mxu0 %v1173
    %1431 = vmatprep.mubr.bf16.mxu0 %v612
    %1432 = vmatmul.mubr.bf16.gmra.mrb[0].mxu0 %v611
    %v1433 = vpop.f32.mrb[0].mxu0
    %v1434 = vadd.f32 %v752, %v1433
    %v1435 = vpop.f32.mrb[0].mxu0
    %v1436 = vadd.f32 %v756, %v1435
    %v1437 = vpop.f32.mrb[0].mxu0
    %v1438 = vpop.f32.mrb[0].mxu0
    %1439 = vdwg.mxu0
    %1440 = vmatprep.subr.bf16.mxu0 %v1176
    %1441 = vmatpush1.bf16.msra.mxu0 %v1175
    %1442 = vmatprep.subr.bf16.mxu0 %v1178
    %1443 = vmatpush1.bf16.msra.mxu0 %v1177
    %1444 = vmatprep.subr.bf16.mxu0 %v1180
    %1445 = vmatpush1.bf16.msra.mxu0 %v1179
    %1446 = vmatprep.subr.bf16.mxu0 %v1182
    %1447 = vmatpush1.bf16.msra.mxu0 %v1181
    %1448 = vmatprep.subr.bf16.mxu0 %v1184
    %1449 = vmatpush1.bf16.msra.mxu0 %v1183
    %1450 = vmatprep.subr.bf16.mxu0 %v1186
    %1451 = vmatpush1.bf16.msra.mxu0 %v1185
    %1452 = vmatprep.subr.bf16.mxu0 %v1188
    %1453 = vmatpush1.bf16.msra.mxu0 %v1187
    %1454 = vmatprep.subr.bf16.mxu0 %v1190
    %1455 = vmatpush1.bf16.msra.mxu0 %v1189
    %1456 = vmatprep.subr.bf16.mxu0 %v1192
    %1457 = vmatpush1.bf16.msra.mxu0 %v1191
    %1458 = vmatprep.subr.bf16.mxu0 %v1194
    %1459 = vmatpush1.bf16.msra.mxu0 %v1193
    %1460 = vmatprep.subr.bf16.mxu0 %v1196
    %1461 = vmatpush1.bf16.msra.mxu0 %v1195
    %1462 = vmatprep.subr.bf16.mxu0 %v1198
    %1463 = vmatpush1.bf16.msra.mxu0 %v1197
    %1464 = vmatprep.subr.bf16.mxu0 %v1200
    %1465 = vmatpush1.bf16.msra.mxu0 %v1199
    %1466 = vmatprep.subr.bf16.mxu0 %v1202
    %1467 = vmatpush1.bf16.msra.mxu0 %v1201
    %1468 = vmatprep.subr.bf16.mxu0 %v1204
    %1469 = vmatpush1.bf16.msra.mxu0 %v1203
    %1470 = vmatprep.subr.bf16.mxu0 %v1206
    %1471 = vmatpush1.bf16.msra.mxu0 %v1205
    %1472 = vmatprep.mubr.bf16.mxu0 %v614
    %1473 = vmatmul.mubr.bf16.gmra.mrb[0].mxu0 %v613
    %v1474 = vpop.f32.mrb[0].mxu0
    %v1475 = vadd.f32 %v1434, %v1474
    %v1476 = vpop.f32.mrb[0].mxu0
    %v1477 = vadd.f32 %v1436, %v1476
    %v1478 = vpop.f32.mrb[0].mxu0
    %v1479 = vpop.f32.mrb[0].mxu0
    %1480 = vdwg.mxu0
    %1481 = vmatprep.subr.bf16.mxu0 %v1208
    %1482 = vmatpush1.bf16.msra.mxu0 %v1207
    %1483 = vmatprep.subr.bf16.mxu0 %v1210
    %1484 = vmatpush1.bf16.msra.mxu0 %v1209
    %1485 = vmatprep.subr.bf16.mxu0 %v1212
    %1486 = vmatpush1.bf16.msra.mxu0 %v1211
    %1487 = vmatprep.subr.bf16.mxu0 %v1214
    %1488 = vmatpush1.bf16.msra.mxu0 %v1213
    %1489 = vmatprep.subr.bf16.mxu0 %v1216
    %1490 = vmatpush1.bf16.msra.mxu0 %v1215
    %1491 = vmatprep.subr.bf16.mxu0 %v1218
    %1492 = vmatpush1.bf16.msra.mxu0 %v1217
    %1493 = vmatprep.subr.bf16.mxu0 %v1220
    %1494 = vmatpush1.bf16.msra.mxu0 %v1219
    %1495 = vmatprep.subr.bf16.mxu0 %v1222
    %1496 = vmatpush1.bf16.msra.mxu0 %v1221
    %1497 = vmatprep.subr.bf16.mxu0 %v1224
    %1498 = vmatpush1.bf16.msra.mxu0 %v1223
    %1499 = vmatprep.subr.bf16.mxu0 %v1226
    %1500 = vmatpush1.bf16.msra.mxu0 %v1225
    %1501 = vmatprep.subr.bf16.mxu0 %v1228
    %1502 = vmatpush1.bf16.msra.mxu0 %v1227
    %1503 = vmatprep.subr.bf16.mxu0 %v1230
    %1504 = vmatpush1.bf16.msra.mxu0 %v1229
    %1505 = vmatprep.subr.bf16.mxu0 %v1232
    %1506 = vmatpush1.bf16.msra.mxu0 %v1231
    %1507 = vmatprep.subr.bf16.mxu0 %v1234
    %1508 = vmatpush1.bf16.msra.mxu0 %v1233
    %1509 = vmatprep.subr.bf16.mxu0 %v1236
    %1510 = vmatpush1.bf16.msra.mxu0 %v1235
    %1511 = vmatprep.subr.bf16.mxu0 %v1238
    %1512 = vmatpush1.bf16.msra.mxu0 %v1237
    %1513 = vmatprep.mubr.bf16.mxu0 %v616
    %1514 = vmatmul.mubr.bf16.gmra.mrb[0].mxu0 %v615
    %v1515 = vpop.f32.mrb[0].mxu0
    %v1516 = vadd.f32 %v1475, %v1515
    %v1517 = vpop.f32.mrb[0].mxu0
    %v1518 = vadd.f32 %v1477, %v1517
    %v1519 = vpop.f32.mrb[0].mxu0
    %v1520 = vpop.f32.mrb[0].mxu0
    %1521 = vdwg.mxu0
    %1522 = vmatprep.subr.bf16.mxu0 %v1240
    %1523 = vmatpush1.bf16.msra.mxu0 %v1239
    %1524 = vmatprep.subr.bf16.mxu0 %v1242
    %1525 = vmatpush1.bf16.msra.mxu0 %v1241
    %1526 = vmatprep.subr.bf16.mxu0 %v1244
    %1527 = vmatpush1.bf16.msra.mxu0 %v1243
    %1528 = vmatprep.subr.bf16.mxu0 %v1246
    %1529 = vmatpush1.bf16.msra.mxu0 %v1245
    %1530 = vmatprep.subr.bf16.mxu0 %v1248
    %1531 = vmatpush1.bf16.msra.mxu0 %v1247
    %1532 = vmatprep.subr.bf16.mxu0 %v1250
    %1533 = vmatpush1.bf16.msra.mxu0 %v1249
    %1534 = vmatprep.subr.bf16.mxu0 %v1252
    %1535 = vmatpush1.bf16.msra.mxu0 %v1251
    %1536 = vmatprep.subr.bf16.mxu0 %v1254
    %1537 = vmatpush1.bf16.msra.mxu0 %v1253
    %1538 = vmatprep.subr.bf16.mxu0 %v1256
    %1539 = vmatpush1.bf16.msra.mxu0 %v1255
    %1540 = vmatprep.subr.bf16.mxu0 %v1258
    %1541 = vmatpush1.bf16.msra.mxu0 %v1257
    %1542 = vmatprep.subr.bf16.mxu0 %v1260
    %1543 = vmatpush1.bf16.msra.mxu0 %v1259
    %1544 = vmatprep.subr.bf16.mxu0 %v1262
    %1545 = vmatpush1.bf16.msra.mxu0 %v1261
    %1546 = vmatprep.subr.bf16.mxu0 %v1264
    %1547 = vmatpush1.bf16.msra.mxu0 %v1263
    %1548 = vmatprep.subr.bf16.mxu0 %v1266
    %1549 = vmatpush1.bf16.msra.mxu0 %v1265
    %1550 = vmatprep.subr.bf16.mxu0 %v1268
    %1551 = vmatpush1.bf16.msra.mxu0 %v1267
    %1552 = vmatprep.subr.bf16.mxu0 %v1270
    %1553 = vmatpush1.bf16.msra.mxu0 %v1269
    %1554 = vmatprep.mubr.bf16.mxu0 %v618
    %1555 = vmatmul.mubr.bf16.gmra.mrb[0].mxu0 %v617
    %v1556 = vpop.f32.mrb[0].mxu0
    %v1557 = vadd.f32 %v1516, %v1556
    %v1558 = vpop.f32.mrb[0].mxu0
    %v1559 = vadd.f32 %v1518, %v1558
    %v1560 = vpop.f32.mrb[0].mxu0
    %v1561 = vpop.f32.mrb[0].mxu0
    %1562 = vdwg.mxu0
    %v1563 = vmul.f32 %v1557, 0.2
    %v1564 = vmul.f32 %v1559, 0.2
    %v1565 = vmax.f32 %v1557, %v1563
    %v1566 = vmax.f32 %v1559, %v1564
    %v1567 = vpack.c.bf16 %v1565, %v1565
    %v1568 = vpack.c.bf16 %v1566, %v1566
    %v1569 = vld [vmem:[#allocation11] sm:$0xff]
    %v1570 = vld [vmem:[#allocation11 + $0x8] sm:$0xff]
    %v1571 = vld [vmem:[#allocation11 + $0x10] sm:$0xff]
    %v1572 = vld [vmem:[#allocation11 + $0x18] sm:$0xff]
    %v1573 = vld [vmem:[#allocation11 + $0x20] sm:$0xff]
    %v1574 = vld [vmem:[#allocation11 + $0x28] sm:$0xff]
    %v1575 = vld [vmem:[#allocation11 + $0x30] sm:$0xff]
    %v1576 = vld [vmem:[#allocation11 + $0x38] sm:$0xff]
    %v1577 = vld [vmem:[#allocation11 + $0x40] sm:$0xff]
    %v1578 = vld [vmem:[#allocation11 + $0x48] sm:$0xff]
    %v1579 = vld [vmem:[#allocation11 + $0x50] sm:$0xff]
    %v1580 = vld [vmem:[#allocation11 + $0x58] sm:$0xff]
    %v1581 = vld [vmem:[#allocation11 + $0x60] sm:$0xff]
    %v1582 = vld [vmem:[#allocation11 + $0x68] sm:$0xff]
    %v1583 = vld [vmem:[#allocation11 + $0x70] sm:$0xff]
    %v1584 = vld [vmem:[#allocation11 + $0x78] sm:$0xff]
    %v1585 = vld [vmem:[#allocation11 + $0x80] sm:$0xff]
    %v1586 = vld [vmem:[#allocation11 + $0x88] sm:$0xff]
    %v1587 = vld [vmem:[#allocation11 + $0x90] sm:$0xff]
    %v1588 = vld [vmem:[#allocation11 + $0x98] sm:$0xff]
    %v1589 = vld [vmem:[#allocation11 + $0xa0] sm:$0xff]
    %v1590 = vld [vmem:[#allocation11 + $0xa8] sm:$0xff]
    %v1591 = vld [vmem:[#allocation11 + $0xb0] sm:$0xff]
    %v1592 = vld [vmem:[#allocation11 + $0xb8] sm:$0xff]
    %v1593 = vld [vmem:[#allocation11 + $0xc0] sm:$0xff]
    %v1594 = vld [vmem:[#allocation11 + $0xc8] sm:$0xff]
    %v1595 = vld [vmem:[#allocation11 + $0xd0] sm:$0xff]
    %v1596 = vld [vmem:[#allocation11 + $0xd8] sm:$0xff]
    %v1597 = vld [vmem:[#allocation11 + $0xe0] sm:$0xff]
    %v1598 = vld [vmem:[#allocation11 + $0xe8] sm:$0xff]
    %v1599 = vld [vmem:[#allocation11 + $0xf0] sm:$0xff]
    %v1600 = vld [vmem:[#allocation11 + $0xf8] sm:$0xff]
    %v1601 = vld [vmem:[#allocation11 + $0x100] sm:$0xff]
    %v1602 = vld [vmem:[#allocation11 + $0x108] sm:$0xff]
    %v1603 = vld [vmem:[#allocation11 + $0x110] sm:$0xff]
    %v1604 = vld [vmem:[#allocation11 + $0x118] sm:$0xff]
    %v1605 = vld [vmem:[#allocation11 + $0x120] sm:$0xff]
    %v1606 = vld [vmem:[#allocation11 + $0x128] sm:$0xff]
    %v1607 = vld [vmem:[#allocation11 + $0x130] sm:$0xff]
    %v1608 = vld [vmem:[#allocation11 + $0x138] sm:$0xff]
    %v1609 = vld [vmem:[#allocation11 + $0x140] sm:$0xff]
    %v1610 = vld [vmem:[#allocation11 + $0x148] sm:$0xff]
    %v1611 = vld [vmem:[#allocation11 + $0x150] sm:$0xff]
    %v1612 = vld [vmem:[#allocation11 + $0x158] sm:$0xff]
    %v1613 = vld [vmem:[#allocation11 + $0x160] sm:$0xff]
    %v1614 = vld [vmem:[#allocation11 + $0x168] sm:$0xff]
    %v1615 = vld [vmem:[#allocation11 + $0x170] sm:$0xff]
    %v1616 = vld [vmem:[#allocation11 + $0x178] sm:$0xff]
    %v1617 = vld [vmem:[#allocation11 + $0x180] sm:$0xff]
    %v1618 = vld [vmem:[#allocation11 + $0x188] sm:$0xff]
    %v1619 = vld [vmem:[#allocation11 + $0x190] sm:$0xff]
    %v1620 = vld [vmem:[#allocation11 + $0x198] sm:$0xff]
    %v1621 = vld [vmem:[#allocation11 + $0x1a0] sm:$0xff]
    %v1622 = vld [vmem:[#allocation11 + $0x1a8] sm:$0xff]
    %v1623 = vld [vmem:[#allocation11 + $0x1b0] sm:$0xff]
    %v1624 = vld [vmem:[#allocation11 + $0x1b8] sm:$0xff]
    %v1625 = vld [vmem:[#allocation11 + $0x1c0] sm:$0xff]
    %v1626 = vld [vmem:[#allocation11 + $0x1c8] sm:$0xff]
    %v1627 = vld [vmem:[#allocation11 + $0x1d0] sm:$0xff]
    %v1628 = vld [vmem:[#allocation11 + $0x1d8] sm:$0xff]
    %v1629 = vld [vmem:[#allocation11 + $0x1e0] sm:$0xff]
    %v1630 = vld [vmem:[#allocation11 + $0x1e8] sm:$0xff]
    %v1631 = vld [vmem:[#allocation11 + $0x1f0] sm:$0xff]
    %v1632 = vld [vmem:[#allocation11 + $0x1f8] sm:$0xff]
    %v1633 = vld [vmem:[%s8] sm:$0xf]
    %v1635 = vlaneseq
    %v1636 = vshrl.u32 %v1635, 7
    %v1637 = vsub.s32 0, %v1636
    %v1638 = vrot.slane %v1633, %v1637
    %v1639 = vlaneseq
    %v1640 = vshrl.u32 %v1639, 7
    %v1641 = vsub.s32 1, %v1640
    %v1642 = vrot.slane %v1633, %v1641
    %v1643 = vlaneseq
    %v1644 = vshrl.u32 %v1643, 7
    %v1645 = vsub.s32 2, %v1644
    %v1646 = vrot.slane %v1633, %v1645
    %v1647 = vlaneseq
    %v1648 = vshrl.u32 %v1647, 7
    %v1649 = vsub.s32 3, %v1648
    %v1650 = vrot.slane %v1633, %v1649
    %v1719 = vunpack.c.l.b16 %v1569
    %v1720 = vunpack.c.h.b16 %v1569
    %v1721 = vunpack.c.l.b16 %v1570
    %v1722 = vunpack.c.h.b16 %v1570
    %v1723 = vunpack.c.l.b16 %v1571
    %v1724 = vunpack.c.h.b16 %v1571
    %v1725 = vunpack.c.l.b16 %v1572
    %v1726 = vunpack.c.h.b16 %v1572
    %v1727 = vunpack.c.l.b16 %v1573
    %v1728 = vunpack.c.h.b16 %v1573
    %v1729 = vunpack.c.l.b16 %v1574
    %v1730 = vunpack.c.h.b16 %v1574
    %v1731 = vunpack.c.l.b16 %v1575
    %v1732 = vunpack.c.h.b16 %v1575
    %v1733 = vunpack.c.l.b16 %v1576
    %v1734 = vunpack.c.h.b16 %v1576
    %v1735 = vunpack.c.l.b16 %v1577
    %v1736 = vunpack.c.h.b16 %v1577
    %v1737 = vunpack.c.l.b16 %v1578
    %v1738 = vunpack.c.h.b16 %v1578
    %v1739 = vunpack.c.l.b16 %v1579
    %v1740 = vunpack.c.h.b16 %v1579
    %v1741 = vunpack.c.l.b16 %v1580
    %v1742 = vunpack.c.h.b16 %v1580
    %v1743 = vunpack.c.l.b16 %v1581
    %v1744 = vunpack.c.h.b16 %v1581
    %v1745 = vunpack.c.l.b16 %v1582
    %v1746 = vunpack.c.h.b16 %v1582
    %v1747 = vunpack.c.l.b16 %v1583
    %v1748 = vunpack.c.h.b16 %v1583
    %v1749 = vunpack.c.l.b16 %v1584
    %v1750 = vunpack.c.h.b16 %v1584
    %v1751 = vunpack.c.l.b16 %v1585
    %v1752 = vunpack.c.h.b16 %v1585
    %v1753 = vunpack.c.l.b16 %v1586
    %v1754 = vunpack.c.h.b16 %v1586
    %v1755 = vunpack.c.l.b16 %v1587
    %v1756 = vunpack.c.h.b16 %v1587
    %v1757 = vunpack.c.l.b16 %v1588
    %v1758 = vunpack.c.h.b16 %v1588
    %v1759 = vunpack.c.l.b16 %v1589
    %v1760 = vunpack.c.h.b16 %v1589
    %v1761 = vunpack.c.l.b16 %v1590
    %v1762 = vunpack.c.h.b16 %v1590
    %v1763 = vunpack.c.l.b16 %v1591
    %v1764 = vunpack.c.h.b16 %v1591
    %v1765 = vunpack.c.l.b16 %v1592
    %v1766 = vunpack.c.h.b16 %v1592
    %v1767 = vunpack.c.l.b16 %v1593
    %v1768 = vunpack.c.h.b16 %v1593
    %v1769 = vunpack.c.l.b16 %v1594
    %v1770 = vunpack.c.h.b16 %v1594
    %v1771 = vunpack.c.l.b16 %v1595
    %v1772 = vunpack.c.h.b16 %v1595
    %v1773 = vunpack.c.l.b16 %v1596
    %v1774 = vunpack.c.h.b16 %v1596
    %v1775 = vunpack.c.l.b16 %v1597
    %v1776 = vunpack.c.h.b16 %v1597
    %v1777 = vunpack.c.l.b16 %v1598
    %v1778 = vunpack.c.h.b16 %v1598
    %v1779 = vunpack.c.l.b16 %v1599
    %v1780 = vunpack.c.h.b16 %v1599
    %v1781 = vunpack.c.l.b16 %v1600
    %v1782 = vunpack.c.h.b16 %v1600
    %v1783 = vunpack.c.l.b16 %v1601
    %v1784 = vunpack.c.h.b16 %v1601
    %v1785 = vunpack.c.l.b16 %v1602
    %v1786 = vunpack.c.h.b16 %v1602
    %v1787 = vunpack.c.l.b16 %v1603
    %v1788 = vunpack.c.h.b16 %v1603
    %v1789 = vunpack.c.l.b16 %v1604
    %v1790 = vunpack.c.h.b16 %v1604
    %v1791 = vunpack.c.l.b16 %v1605
    %v1792 = vunpack.c.h.b16 %v1605
    %v1793 = vunpack.c.l.b16 %v1606
    %v1794 = vunpack.c.h.b16 %v1606
    %v1795 = vunpack.c.l.b16 %v1607
    %v1796 = vunpack.c.h.b16 %v1607
    %v1797 = vunpack.c.l.b16 %v1608
    %v1798 = vunpack.c.h.b16 %v1608
    %v1799 = vunpack.c.l.b16 %v1609
    %v1800 = vunpack.c.h.b16 %v1609
    %v1801 = vunpack.c.l.b16 %v1610
    %v1802 = vunpack.c.h.b16 %v1610
    %v1803 = vunpack.c.l.b16 %v1611
    %v1804 = vunpack.c.h.b16 %v1611
    %v1805 = vunpack.c.l.b16 %v1612
    %v1806 = vunpack.c.h.b16 %v1612
    %v1807 = vunpack.c.l.b16 %v1613
    %v1808 = vunpack.c.h.b16 %v1613
    %v1809 = vunpack.c.l.b16 %v1614
    %v1810 = vunpack.c.h.b16 %v1614
    %v1811 = vunpack.c.l.b16 %v1615
    %v1812 = vunpack.c.h.b16 %v1615
    %v1813 = vunpack.c.l.b16 %v1616
    %v1814 = vunpack.c.h.b16 %v1616
    %v1815 = vunpack.c.l.b16 %v1617
    %v1816 = vunpack.c.h.b16 %v1617
    %v1817 = vunpack.c.l.b16 %v1618
    %v1818 = vunpack.c.h.b16 %v1618
    %v1819 = vunpack.c.l.b16 %v1619
    %v1820 = vunpack.c.h.b16 %v1619
    %v1821 = vunpack.c.l.b16 %v1620
    %v1822 = vunpack.c.h.b16 %v1620
    %v1823 = vunpack.c.l.b16 %v1621
    %v1824 = vunpack.c.h.b16 %v1621
    %v1825 = vunpack.c.l.b16 %v1622
    %v1826 = vunpack.c.h.b16 %v1622
    %v1827 = vunpack.c.l.b16 %v1623
    %v1828 = vunpack.c.h.b16 %v1623
    %v1829 = vunpack.c.l.b16 %v1624
    %v1830 = vunpack.c.h.b16 %v1624
    %v1831 = vunpack.c.l.b16 %v1625
    %v1832 = vunpack.c.h.b16 %v1625
    %v1833 = vunpack.c.l.b16 %v1626
    %v1834 = vunpack.c.h.b16 %v1626
    %v1835 = vunpack.c.l.b16 %v1627
    %v1836 = vunpack.c.h.b16 %v1627
    %v1837 = vunpack.c.l.b16 %v1628
    %v1838 = vunpack.c.h.b16 %v1628
    %v1839 = vunpack.c.l.b16 %v1629
    %v1840 = vunpack.c.h.b16 %v1629
    %v1841 = vunpack.c.l.b16 %v1630
    %v1842 = vunpack.c.h.b16 %v1630
    %v1843 = vunpack.c.l.b16 %v1631
    %v1844 = vunpack.c.h.b16 %v1631
    %v1845 = vunpack.c.l.b16 %v1632
    %v1846 = vunpack.c.h.b16 %v1632
    %v1847 = vpack.c.b16 %v1723, %v1719
    %v1848 = vpack.c.b16 %v1724, %v1720
    %v1849 = vpack.c.b16 %v1725, %v1721
    %v1850 = vpack.c.b16 %v1726, %v1722
    %v1851 = vpack.c.b16 %v1731, %v1727
    %v1852 = vpack.c.b16 %v1732, %v1728
    %v1853 = vpack.c.b16 %v1733, %v1729
    %v1854 = vpack.c.b16 %v1734, %v1730
    %v1855 = vpack.c.b16 %v1739, %v1735
    %v1856 = vpack.c.b16 %v1740, %v1736
    %v1857 = vpack.c.b16 %v1741, %v1737
    %v1858 = vpack.c.b16 %v1742, %v1738
    %v1859 = vpack.c.b16 %v1747, %v1743
    %v1860 = vpack.c.b16 %v1748, %v1744
    %v1861 = vpack.c.b16 %v1749, %v1745
    %v1862 = vpack.c.b16 %v1750, %v1746
    %v1863 = vpack.c.b16 %v1755, %v1751
    %v1864 = vpack.c.b16 %v1756, %v1752
    %v1865 = vpack.c.b16 %v1757, %v1753
    %v1866 = vpack.c.b16 %v1758, %v1754
    %v1867 = vpack.c.b16 %v1763, %v1759
    %v1868 = vpack.c.b16 %v1764, %v1760
    %v1869 = vpack.c.b16 %v1765, %v1761
    %v1870 = vpack.c.b16 %v1766, %v1762
    %v1871 = vpack.c.b16 %v1771, %v1767
    %v1872 = vpack.c.b16 %v1772, %v1768
    %v1873 = vpack.c.b16 %v1773, %v1769
    %v1874 = vpack.c.b16 %v1774, %v1770
    %v1875 = vpack.c.b16 %v1779, %v1775
    %v1876 = vpack.c.b16 %v1780, %v1776
    %v1877 = vpack.c.b16 %v1781, %v1777
    %v1878 = vpack.c.b16 %v1782, %v1778
    %v1879 = vpack.c.b16 %v1787, %v1783
    %v1880 = vpack.c.b16 %v1788, %v1784
    %v1881 = vpack.c.b16 %v1789, %v1785
    %v1882 = vpack.c.b16 %v1790, %v1786
    %v1883 = vpack.c.b16 %v1795, %v1791
    %v1884 = vpack.c.b16 %v1796, %v1792
    %v1885 = vpack.c.b16 %v1797, %v1793
    %v1886 = vpack.c.b16 %v1798, %v1794
    %v1887 = vpack.c.b16 %v1803, %v1799
    %v1888 = vpack.c.b16 %v1804, %v1800
    %v1889 = vpack.c.b16 %v1805, %v1801
    %v1890 = vpack.c.b16 %v1806, %v1802
    %v1891 = vpack.c.b16 %v1811, %v1807
    %v1892 = vpack.c.b16 %v1812, %v1808
    %v1893 = vpack.c.b16 %v1813, %v1809
    %v1894 = vpack.c.b16 %v1814, %v1810
    %v1895 = vpack.c.b16 %v1819, %v1815
    %v1896 = vpack.c.b16 %v1820, %v1816
    %v1897 = vpack.c.b16 %v1821, %v1817
    %v1898 = vpack.c.b16 %v1822, %v1818
    %v1899 = vpack.c.b16 %v1827, %v1823
    %v1900 = vpack.c.b16 %v1828, %v1824
    %v1901 = vpack.c.b16 %v1829, %v1825
    %v1902 = vpack.c.b16 %v1830, %v1826
    %v1903 = vpack.c.b16 %v1835, %v1831
    %v1904 = vpack.c.b16 %v1836, %v1832
    %v1905 = vpack.c.b16 %v1837, %v1833
    %v1906 = vpack.c.b16 %v1838, %v1834
    %v1907 = vpack.c.b16 %v1843, %v1839
    %v1908 = vpack.c.b16 %v1844, %v1840
    %v1909 = vpack.c.b16 %v1845, %v1841
    %v1910 = vpack.c.b16 %v1846, %v1842
    %1975 = vmatprep.subr.bf16.mxu0 %v1848
    %1976 = vmatpush1.bf16.msra.mxu0 %v1847
    %1977 = vmatprep.subr.bf16.mxu0 %v1852
    %1978 = vmatpush1.bf16.msra.mxu0 %v1851
    %1979 = vmatprep.subr.bf16.mxu0 %v1856
    %1980 = vmatpush1.bf16.msra.mxu0 %v1855
    %1981 = vmatprep.subr.bf16.mxu0 %v1860
    %1982 = vmatpush1.bf16.msra.mxu0 %v1859
    %1983 = vmatprep.subr.bf16.mxu0 %v1864
    %1984 = vmatpush1.bf16.msra.mxu0 %v1863
    %1985 = vmatprep.subr.bf16.mxu0 %v1868
    %1986 = vmatpush1.bf16.msra.mxu0 %v1867
    %1987 = vmatprep.subr.bf16.mxu0 %v1872
    %1988 = vmatpush1.bf16.msra.mxu0 %v1871
    %1989 = vmatprep.subr.bf16.mxu0 %v1876
    %1990 = vmatpush1.bf16.msra.mxu0 %v1875
    %1991 = vmatprep.subr.bf16.mxu0 %v1880
    %1992 = vmatpush1.bf16.msra.mxu0 %v1879
    %1993 = vmatprep.subr.bf16.mxu0 %v1884
    %1994 = vmatpush1.bf16.msra.mxu0 %v1883
    %1995 = vmatprep.subr.bf16.mxu0 %v1888
    %1996 = vmatpush1.bf16.msra.mxu0 %v1887
    %1997 = vmatprep.subr.bf16.mxu0 %v1892
    %1998 = vmatpush1.bf16.msra.mxu0 %v1891
    %1999 = vmatprep.subr.bf16.mxu0 %v1896
    %2000 = vmatpush1.bf16.msra.mxu0 %v1895
    %2001 = vmatprep.subr.bf16.mxu0 %v1900
    %2002 = vmatpush1.bf16.msra.mxu0 %v1899
    %2003 = vmatprep.subr.bf16.mxu0 %v1904
    %2004 = vmatpush1.bf16.msra.mxu0 %v1903
    %2005 = vmatprep.subr.bf16.mxu0 %v1908
    %2006 = vmatpush1.bf16.msra.mxu0 %v1907
    %2007 = vmatprep.mubr.bf16.mxu0 %v1568
    %2008 = vmatmul.mubr.bf16.gmra.mrb[0].mxu0 %v1567
    %v2009 = vpop.f32.mrb[0].mxu0
    %v2010 = vadd.f32 %v1638, %v2009
    %v2011 = vpop.f32.mrb[0].mxu0
    %v2012 = vadd.f32 %v1642, %v2011
    %v2013 = vpop.f32.mrb[0].mxu0
    %v2014 = vpop.f32.mrb[0].mxu0
    %2015 = vdwg.mxu0
    %2016 = vmatprep.subr.bf16.mxu0 %v1850
    %2017 = vmatpush1.bf16.msra.mxu0 %v1849
    %2018 = vmatprep.subr.bf16.mxu0 %v1854
    %2019 = vmatpush1.bf16.msra.mxu0 %v1853
    %2020 = vmatprep.subr.bf16.mxu0 %v1858
    %2021 = vmatpush1.bf16.msra.mxu0 %v1857
    %2022 = vmatprep.subr.bf16.mxu0 %v1862
    %2023 = vmatpush1.bf16.msra.mxu0 %v1861
    %2024 = vmatprep.subr.bf16.mxu0 %v1866
    %2025 = vmatpush1.bf16.msra.mxu0 %v1865
    %2026 = vmatprep.subr.bf16.mxu0 %v1870
    %2027 = vmatpush1.bf16.msra.mxu0 %v1869
    %2028 = vmatprep.subr.bf16.mxu0 %v1874
    %2029 = vmatpush1.bf16.msra.mxu0 %v1873
    %2030 = vmatprep.subr.bf16.mxu0 %v1878
    %2031 = vmatpush1.bf16.msra.mxu0 %v1877
    %2032 = vmatprep.subr.bf16.mxu0 %v1882
    %2033 = vmatpush1.bf16.msra.mxu0 %v1881
    %2034 = vmatprep.subr.bf16.mxu0 %v1886
    %2035 = vmatpush1.bf16.msra.mxu0 %v1885
    %2036 = vmatprep.subr.bf16.mxu0 %v1890
    %2037 = vmatpush1.bf16.msra.mxu0 %v1889
    %2038 = vmatprep.subr.bf16.mxu0 %v1894
    %2039 = vmatpush1.bf16.msra.mxu0 %v1893
    %2040 = vmatprep.subr.bf16.mxu0 %v1898
    %2041 = vmatpush1.bf16.msra.mxu0 %v1897
    %2042 = vmatprep.subr.bf16.mxu0 %v1902
    %2043 = vmatpush1.bf16.msra.mxu0 %v1901
    %2044 = vmatprep.subr.bf16.mxu0 %v1906
    %2045 = vmatpush1.bf16.msra.mxu0 %v1905
    %2046 = vmatprep.subr.bf16.mxu0 %v1910
    %2047 = vmatpush1.bf16.msra.mxu0 %v1909
    %2048 = vmatprep.mubr.bf16.mxu0 %v1568
    %2049 = vmatmul.mubr.bf16.gmra.mrb[0].mxu0 %v1567
    %v2050 = vpop.f32.mrb[0].mxu0
    %v2051 = vadd.f32 %v1646, %v2050
    %v2052 = vpop.f32.mrb[0].mxu0
    %v2053 = vadd.f32 %v1650, %v2052
    %v2054 = vpop.f32.mrb[0].mxu0
    %v2055 = vpop.f32.mrb[0].mxu0
    %2056 = vdwg.mxu0
    %v2057 = vmax.f32 %v2010, 0.0
    %v2058 = vmax.f32 %v2012, 0.0
    %v2059 = vmax.f32 %v2051, 0.0
    %v2060 = vmax.f32 %v2053, 0.0
    %2061 = vst [vmem:[#allocation13] sm:$0xff] %v2057
    %2062 = vst [vmem:[#allocation13 + $0x8] sm:$0xff] %v2058
    %2063 = vst [vmem:[#allocation13 + $0x10] sm:$0xff] %v2059
    %2064 = vst [vmem:[#allocation13 + $0x18] sm:$0xff] %v2060
    // Predicated region
    $region62: #{tpu_custom_call.1} parent=1 // pred_check
      _
    $region63: #{tpu_custom_call.1} parent=1 // pred_check_branch
      %2066 = sbr.rel (0) target = $region65
    $region64: #{tpu_custom_call.1} parent=1 // pred_region
      %s2068 = ssub.s32 512, 512
      %2069 = vsyncadd [#allocation4], %s2068
      %s2071 = sshll.u32 [#allocation13], 4
      %s2072 = int_to_ptr.vmem [resolvable:$true] %s2071
      %2074 = dma.vmem_to_hbm [thread:$0]  %s2072, 512, %s9, [#allocation4]
    $region65: #{tpu_custom_call.1} parent=1 // pred_fallthru
      _
    // Predicated region
    $region66: #{tpu_custom_call.1} parent=1 // pred_check
      _
    $region67: #{tpu_custom_call.1} parent=1 // pred_check_branch
      %2076 = sbr.rel (0) target = $region69
    $region68: #{tpu_custom_call.1} parent=1 // pred_region
      %2077 = dma.done [#allocation4], 512
    $region69: #{tpu_custom_call.1} parent=1 // pred_fallthru
      _
    %2078 = vsyncpa [#allocation3], 1
    %2079 = vsyncpa [#allocation6], 1
    %2080 = vsyncpa [#allocation9], 1
    %2081 = vsyncpa [#allocation12], 1
    %2082 = vsyncpa [#allocation4], 1

</llo_original>
